<compile_context>
chip_gen: v5e
topology: v5e:2x2
jax: 0.10.0
libtpu: 0.0.40
codegen_flags: <defaults>
</compile_context>

<pallas_src>
import functools

import numpy as np
import jax
import jax.numpy as jnp
from jax.experimental import pallas as pl
from jax.experimental.pallas import tpu as pltpu


def _round_up(x, m):
    return ((x + m - 1) // m) * m


def lstm_fc_kernel(x_ref, w_ih_ref, w_hh_ref, b_ref, w_fc_ref, b_fc_ref,
                   out_ref, gx_scr, h_scr, c_scr, *,
                   seq_len, time_chunk, batch_block, hidden_pad, matmul_dtype,
                   unroll):
    TC, BB, HP = time_chunk, batch_block, hidden_pad
    t_chunk = pl.program_id(1)

    # Reset the recurrence state at the start of each batch block's time loop.
    @pl.when(t_chunk == 0)
    def _():
        h_scr[...] = jnp.zeros_like(h_scr)
        c_scr[...] = jnp.zeros_like(c_scr)

    # ---- per-chunk input projection, hoisted off the serial chain ----
    # (TC*BB, E) @ (E, 4*HP) + bias in one MXU call; bias folded here so the
    # per-step critical path is only h @ w_hh + VPU/EUP gate math.
    gx = (jnp.dot(x_ref[...], w_ih_ref[...], preferred_element_type=jnp.float32)
          + b_ref[...])
    gx_scr[...] = gx.astype(gx_scr.dtype)

    def step(t, carry):
        h, c = carry
        row0 = pl.multiple_of(t * BB, 8)
        # NOTE: w_hh_ref is read inside the dot (not hoisted to a value) so
        # the weight stays an MXU operand in VMEM instead of pinned vregs.
        gates = (gx_scr[pl.ds(row0, BB), :].astype(jnp.float32)
                 + jnp.dot(h.astype(matmul_dtype), w_hh_ref[...],
                           preferred_element_type=jnp.float32))   # (BB, 4*HP)
        # PyTorch gate order (i, f, g, o); each slice is 128-lane aligned.
        i_g = jax.nn.sigmoid(gates[:, 0 * HP:1 * HP])
        f_g = jax.nn.sigmoid(gates[:, 1 * HP:2 * HP])
        g_g = jnp.tanh(gates[:, 2 * HP:3 * HP])
        o_g = jax.nn.sigmoid(gates[:, 3 * HP:4 * HP])
        c_new = f_g * c + i_g * g_g
        h_new = o_g * jnp.tanh(c_new)
        if seq_len % TC != 0:
            # Time axis was zero-padded up to a multiple of TC; freeze the
            # state on padded steps so the recurrence stays exact.
            valid = (t_chunk * TC + t) < seq_len
            h_new = jnp.where(valid, h_new, h)
            c_new = jnp.where(valid, c_new, c)
        return (h_new, c_new)

    h_last, c_last = jax.lax.fori_loop(0, TC, step, (h_scr[...], c_scr[...]),
                                       unroll=unroll)
    h_scr[...] = h_last
    c_scr[...] = c_last

    # fc(out[:, -1, :]) fused; (BB, VP) lane-dense store on the last chunk.
    @pl.when(t_chunk == pl.num_programs(1) - 1)
    def _():
        out_ref[...] = (
            jnp.dot(h_last.astype(matmul_dtype), w_fc_ref[...],
                    preferred_element_type=jnp.float32)
            + b_fc_ref[...])


def char_predictor_forward(tokens, params, *, matmul_dtype=jnp.float32,
                           time_chunk=None):
    """Forward pass matching CharPredictor (LSTM variant).

    matmul_dtype=jnp.bfloat16 feeds the MXU bf16 operands (valid on
    v5e/v6e/v7x); gate math, recurrence state and accumulation stay f32.
    """
    emb = params["embed"]                       # (V, E)
    w_ih, w_hh, b = params["w_ih"], params["w_hh"], params["b"]
    w_fc, b_fc = params["w_fc"], params["b_fc"]
    B, T = tokens.shape
    V, E = emb.shape
    H = w_hh.shape[0]

    HP = _round_up(H, 128)     # lane-align every gate slice
    VP = _round_up(V, 128)     # lane-dense logits writeback

    # Batch blocking: one wide block for realistic batches (feed the MXU rows);
    # split into a 'parallel' grid axis only for very large batches (megacore
    # on v7x).
    BB = min(_round_up(B, 8), 256)
    BPT = _round_up(B, BB)
    n_bblocks = BPT // BB

    item_x = np.dtype(matmul_dtype).itemsize
    gx_dtype = matmul_dtype            # bf16 halves the dominant scratch
    item_gx = np.dtype(gx_dtype).itemsize

    # Time chunking: bound per-chunk activations (~8 MiB) so the design fits
    # v7x's 64 MiB VMEM and the next chunk's DMA overlaps this chunk's compute.
    if time_chunk is None:
        per_step = BB * (2 * E * item_x + 4 * HP * item_gx)
        time_chunk = int(min(T, max(1, (8 << 20) // max(per_step, 1))))
    TC = int(time_chunk)
    n_chunks = (T + TC - 1) // TC
    TPad = n_chunks * TC

    # --- glue (not the hot path): embedding gather, pad, chunk layout ---
    x = emb[tokens].astype(jnp.float32)                        # (B, T, E)
    x = jnp.pad(x, ((0, BPT - B), (0, TPad - T), (0, 0)))      # (BPT, TPad, E)
    x = x.reshape(n_bblocks, BB, n_chunks, TC, E)
    x = jnp.transpose(x, (0, 2, 3, 1, 4))                      # (nb,nc,TC,BB,E)
    x_blk = x.reshape(n_bblocks, n_chunks, TC * BB, E).astype(matmul_dtype)

    def pad_gate_cols(w):   # (..., 4H) -> (..., 4*HP), zero-pad each gate block
        w4 = w.reshape(w.shape[:-1] + (4, H))
        w4 = jnp.pad(w4, [(0, 0)] * (w4.ndim - 1) + [(0, HP - H)])
        return w4.reshape(w.shape[:-1] + (4 * HP,))

    w_ih_p = pad_gate_cols(w_ih).astype(matmul_dtype)                        # (E, 4HP)
    w_hh_p = jnp.pad(pad_gate_cols(w_hh),
                     ((0, HP - H), (0, 0))).astype(matmul_dtype)             # (HP, 4HP)
    b_p = pad_gate_cols(b).astype(jnp.float32)                               # (1, 4HP)
    w_fc_p = jnp.pad(w_fc, ((0, HP - H), (0, VP - V))).astype(matmul_dtype)  # (HP, VP)
    b_fc_p = jnp.pad(b_fc, ((0, 0), (0, VP - V))).astype(jnp.float32)        # (1, VP)

    kernel = functools.partial(
        lstm_fc_kernel, seq_len=T, time_chunk=TC, batch_block=BB,
        hidden_pad=HP, matmul_dtype=matmul_dtype, unroll=int(min(TC, 8)))

    # Explicit scoped-VMEM budget (defaults: 16 MiB v5e / 32 MiB v6e+v7x).
    vmem_need = (
        2 * TC * BB * E * item_x          # x chunk (double-buffered)
        + TC * BB * 4 * HP * item_gx      # gx scratch
        + E * 4 * HP * item_x             # w_ih
        + HP * 4 * HP * item_x            # w_hh
        + HP * VP * item_x                # w_fc
        + (4 * HP + VP) * 4               # biases
        + 2 * BB * HP * 4                 # h / c scratch
        + 2 * BB * VP * 4)                # logits block
    vmem_limit = int(min(max(2 * vmem_need + (2 << 20), 32 << 20), 100 << 20))

    flops = (2 * TPad * BPT * E * 4 * HP            # input projection
             + 2 * TPad * BPT * HP * 4 * HP         # recurrence
             + 2 * BPT * HP * VP)                   # fc head
    transcendentals = 5 * TPad * BPT * HP
    bytes_accessed = (x_blk.size * item_x
                      + (w_ih_p.size + w_hh_p.size + w_fc_p.size) * item_x
                      + (b_p.size + b_fc_p.size) * 4
                      + BPT * VP * 4)

    grid_spec = pltpu.PrefetchScalarGridSpec(
        num_scalar_prefetch=0,
        grid=(n_bblocks, n_chunks),
        in_specs=[
            pl.BlockSpec((None, None, TC * BB, E), lambda i, t: (i, t, 0, 0)),
            pl.BlockSpec((E, 4 * HP), lambda i, t: (0, 0)),
            pl.BlockSpec((HP, 4 * HP), lambda i, t: (0, 0)),
            pl.BlockSpec((1, 4 * HP), lambda i, t: (0, 0)),
            pl.BlockSpec((HP, VP), lambda i, t: (0, 0)),
            pl.BlockSpec((1, VP), lambda i, t: (0, 0)),
        ],
        out_specs=pl.BlockSpec((BB, VP), lambda i, t: (i, 0)),
        scratch_shapes=[
            pltpu.VMEM((TC * BB, 4 * HP), gx_dtype),   # gx (per-chunk)
            pltpu.VMEM((BB, HP), jnp.float32),         # h (persists over t)
            pltpu.VMEM((BB, HP), jnp.float32),         # c (persists over t)
        ])

    out_padded = pl.pallas_call(
        kernel,
        out_shape=jax.ShapeDtypeStruct((BPT, VP), jnp.float32),
        grid_spec=grid_spec,
        compiler_params=pltpu.CompilerParams(
            dimension_semantics=("parallel", "arbitrary"),
            vmem_limit_bytes=vmem_limit),
        cost_estimate=pl.CostEstimate(
            flops=int(flops), transcendentals=int(transcendentals),
            bytes_accessed=int(bytes_accessed)),
    )(x_blk, w_ih_p, w_hh_p, b_p, w_fc_p, b_fc_p)

    return out_padded[:B, :V]


def reference_forward(tokens, params):
    """Pure-JAX reference matching PyTorch LSTM semantics."""
    emb = params["embed"]
    w_ih, w_hh, b = params["w_ih"], params["w_hh"], params["b"]
    w_fc, b_fc = params["w_fc"], params["b_fc"]
    H = w_hh.shape[0]
    x = emb[tokens].astype(jnp.float32)         # (B, T, E)
    B = x.shape[0]

    def step(carry, x_t):
        h, c = carry
        gates = x_t @ w_ih + h @ w_hh + b[0]
        i = jax.nn.sigmoid(gates[:, 0 * H:1 * H])
        f = jax.nn.sigmoid(gates[:, 1 * H:2 * H])
        g = jnp.tanh(gates[:, 2 * H:3 * H])
        o = jax.nn.sigmoid(gates[:, 3 * H:4 * H])
        c = f * c + i * g
        h = o * jnp.tanh(c)
        return (h, c), None

    h0 = jnp.zeros((B, H), jnp.float32)
    (h, _), _ = jax.lax.scan(step, (h0, h0), jnp.transpose(x, (1, 0, 2)))
    return h @ w_fc + b_fc[0]


def init_params(key, vocab_size, embed_dim, hidden_size):
    ks = jax.random.split(key, 6)
    s = 1.0 / float(np.sqrt(hidden_size))
    return {
        "embed": jax.random.normal(ks[0], (vocab_size, embed_dim), jnp.float32),
        "w_ih": jax.random.uniform(ks[1], (embed_dim, 4 * hidden_size),
                                   jnp.float32, -s, s),
        "w_hh": jax.random.uniform(ks[2], (hidden_size, 4 * hidden_size),
                                   jnp.float32, -s, s),
        "b":    jax.random.uniform(ks[3], (1, 4 * hidden_size),
                                   jnp.float32, -s, s),
        "w_fc": jax.random.uniform(ks[4], (hidden_size, vocab_size),
                                   jnp.float32, -s, s),
        "b_fc": jax.random.uniform(ks[5], (1, vocab_size),
                                   jnp.float32, -s, s),
    }


if __name__ == "__main__":
    VOCAB, EMBED, HIDDEN = 16, 32, 32
    B, T = 2, 8

    key = jax.random.PRNGKey(0)
    pkey, tkey = jax.random.split(key)
    params = init_params(pkey, VOCAB, EMBED, HIDDEN)
    tokens = jax.random.randint(tkey, (B, T), 0, VOCAB, dtype=jnp.int32)

    ref = jax.block_until_ready(reference_forward(tokens, params))

    # f32 MXU operands: strict check.
    out = jax.block_until_ready(char_predictor_forward(tokens, params))
    assert out.shape == (B, VOCAB)
    assert jnp.allclose(out, ref, rtol=1e-5, atol=1e-4), "f32 mismatch vs reference"

    # bf16 MXU operands (valid on v5e/v6e/v7x): loose tolerance, gate math is f32.
    out_bf16 = jax.block_until_ready(
        char_predictor_forward(tokens, params, matmul_dtype=jnp.bfloat16))
    assert out_bf16.shape == (B, VOCAB)
    assert jnp.allclose(out_bf16, ref, rtol=5e-2, atol=2.5e-1), \
        "bf16 mismatch vs reference"

    print("KERNEL_OK")
</pallas_src>

<mosaic_0001>
module attributes {stable_mosaic.version = 11 : i64} {
  func.func @lstm_fc_kernel(%arg0: i32, %arg1: i32, %arg2: memref<1x1x64x32xf32, #tpu.memory_space<vmem>>, %arg3: memref<32x512xf32, #tpu.memory_space<vmem>>, %arg4: memref<128x512xf32, #tpu.memory_space<vmem>>, %arg5: memref<1x512xf32, #tpu.memory_space<vmem>>, %arg6: memref<128x128xf32, #tpu.memory_space<vmem>>, %arg7: memref<1x128xf32, #tpu.memory_space<vmem>>, %arg8: memref<8x128xf32, #tpu.memory_space<vmem>>, %arg9: memref<64x512xf32, #tpu.memory_space<vmem>>, %arg10: memref<8x128xf32, #tpu.memory_space<vmem>>, %arg11: memref<8x128xf32, #tpu.memory_space<vmem>>) attributes {dimension_semantics = [#tpu.dimension_semantics<parallel>, #tpu.dimension_semantics<arbitrary>], iteration_bounds = array<i64: 1, 1>, scalar_prefetch = 0 : i64, scratch_operands = 3 : i64, tpu.core_type = #tpu.core_type<tc>, window_params = [{transform_indices = @transform_0, window_bounds = array<i64: 1, 1, 64, 32>}, {pipeline_mode = #tpu.pipeline_mode<synchronous>, transform_indices = @transform_1, window_bounds = array<i64: 32, 512>}, {pipeline_mode = #tpu.pipeline_mode<synchronous>, transform_indices = @transform_2, window_bounds = array<i64: 128, 512>}, {pipeline_mode = #tpu.pipeline_mode<synchronous>, transform_indices = @transform_3, window_bounds = array<i64: 1, 512>}, {pipeline_mode = #tpu.pipeline_mode<synchronous>, transform_indices = @transform_4, window_bounds = array<i64: 128, 128>}, {pipeline_mode = #tpu.pipeline_mode<synchronous>, transform_indices = @transform_5, window_bounds = array<i64: 1, 128>}, {transform_indices = @transform_6, window_bounds = array<i64: 8, 128>}]} {
    %c0_i32 = arith.constant 0 : i32
    %0 = arith.cmpi eq, %arg1, %c0_i32 : i32
    %1 = arith.extui %0 : i1 to i32
    %c0_i32_0 = arith.constant 0 : i32
    %2 = arith.cmpi ne, %1, %c0_i32_0 : i32
    scf.if %2 {
      %cst_85 = arith.constant 0.000000e+00 : f32
      %274 = vector.broadcast %cst_85 : f32 to vector<8x128xf32>
      %c0_86 = arith.constant 0 : index
      %c0_87 = arith.constant 0 : index
      %275 = vector.load %arg10[%c0_86, %c0_87] : memref<8x128xf32, #tpu.memory_space<vmem>>, vector<8x128xf32>
      tpu.vector_store %arg10[%c0_86, %c0_87], %274 {strides = array<i32>} : memref<8x128xf32, #tpu.memory_space<vmem>>, vector<8x128xf32>,
      %cst_88 = arith.constant 0.000000e+00 : f32
      %276 = vector.broadcast %cst_88 : f32 to vector<8x128xf32>
      %c0_89 = arith.constant 0 : index
      %c0_90 = arith.constant 0 : index
      %277 = vector.load %arg11[%c0_89, %c0_90] : memref<8x128xf32, #tpu.memory_space<vmem>>, vector<8x128xf32>
      tpu.vector_store %arg11[%c0_89, %c0_90], %276 {strides = array<i32>} : memref<8x128xf32, #tpu.memory_space<vmem>>, vector<8x128xf32>,
    } else {
    }
    %c0 = arith.constant 0 : index
    %c0_1 = arith.constant 0 : index
    %c0_2 = arith.constant 0 : index
    %c0_3 = arith.constant 0 : index
    %3 = vector.load %arg2[%c0, %c0_1, %c0_2, %c0_3] : memref<1x1x64x32xf32, #tpu.memory_space<vmem>>, vector<1x1x64x32xf32>
    %4 = vector.shape_cast %3 : vector<1x1x64x32xf32> to vector<64x32xf32>
    %c0_4 = arith.constant 0 : index
    %c0_5 = arith.constant 0 : index
    %5 = vector.load %arg3[%c0_4, %c0_5] : memref<32x512xf32, #tpu.memory_space<vmem>>, vector<32x512xf32>
    %cst = arith.constant dense<0.000000e+00> : vector<64x512xf32>
    %6 = tpu.matmul %4, %5, %cst {dimension_numbers = #tpu.dot_dimension_numbers<[1], [0], [0], [1], [0, 0, 1, 1], [], []>} : vector<64x32xf32>, vector<32x512xf32>, vector<64x512xf32> -> vector<64x512xf32>
    %c0_6 = arith.constant 0 : index
    %c0_7 = arith.constant 0 : index
    %7 = vector.load %arg5[%c0_6, %c0_7] : memref<1x512xf32, #tpu.memory_space<vmem>>, vector<1x512xf32>
    %8 = vector.broadcast %7 : vector<1x512xf32> to vector<64x512xf32>
    %9 = arith.addf %6, %8 : vector<64x512xf32>
    %c0_8 = arith.constant 0 : index
    %c0_9 = arith.constant 0 : index
    %10 = vector.load %arg9[%c0_8, %c0_9] : memref<64x512xf32, #tpu.memory_space<vmem>>, vector<64x512xf32>
    tpu.vector_store %arg9[%c0_8, %c0_9], %9 {strides = array<i32>} : memref<64x512xf32, #tpu.memory_space<vmem>>, vector<64x512xf32>,
    %c0_10 = arith.constant 0 : index
    %c0_11 = arith.constant 0 : index
    %11 = vector.load %arg10[%c0_10, %c0_11] : memref<8x128xf32, #tpu.memory_space<vmem>>, vector<8x128xf32>
    %c0_12 = arith.constant 0 : index
    %c0_13 = arith.constant 0 : index
    %12 = vector.load %arg11[%c0_12, %c0_13] : memref<8x128xf32, #tpu.memory_space<vmem>>, vector<8x128xf32>
    %c0_i32_14 = arith.constant 0 : i32
    %c8_i32 = arith.constant 8 : i32
    %13 = arith.muli %c0_i32_14, %c8_i32 : i32
    %14 = tpu.assume_multiple %13, 8 : i32
    %15 = arith.index_cast %14 : i32 to index
    %c0_15 = arith.constant 0 : index
    %16 = vector.load %arg9[%15, %c0_15] : memref<64x512xf32, #tpu.memory_space<vmem>>, vector<8x512xf32>
    %c0_16 = arith.constant 0 : index
    %c0_17 = arith.constant 0 : index
    %17 = vector.load %arg4[%c0_16, %c0_17] : memref<128x512xf32, #tpu.memory_space<vmem>>, vector<128x512xf32>
    %cst_18 = arith.constant dense<0.000000e+00> : vector<8x512xf32>
    %18 = tpu.matmul %11, %17, %cst_18 {dimension_numbers = #tpu.dot_dimension_numbers<[1], [0], [0], [1], [0, 0, 1, 1], [], []>} : vector<8x128xf32>, vector<128x512xf32>, vector<8x512xf32> -> vector<8x512xf32>
    %19 = arith.addf %16, %18 : vector<8x512xf32>
    %20 = vector.extract_strided_slice %19 {offsets = [0, 0], sizes = [8, 128], strides = [1, 1]} : vector<8x512xf32> to vector<8x128xf32>
    %21 = arith.negf %20 : vector<8x128xf32>
    %22 = math.exp %21 : vector<8x128xf32>
    %cst_19 = arith.constant 1.000000e+00 : f32
    %23 = vector.broadcast %cst_19 : f32 to vector<8x128xf32>
    %24 = arith.addf %23, %22 : vector<8x128xf32>
    %25 = arith.divf %23, %24 : vector<8x128xf32>
    %26 = vector.extract_strided_slice %19 {offsets = [0, 128], sizes = [8, 128], strides = [1, 1]} : vector<8x512xf32> to vector<8x128xf32>
    %27 = arith.negf %26 : vector<8x128xf32>
    %28 = math.exp %27 : vector<8x128xf32>
    %cst_20 = arith.constant 1.000000e+00 : f32
    %29 = vector.broadcast %cst_20 : f32 to vector<8x128xf32>
    %30 = arith.addf %29, %28 : vector<8x128xf32>
    %31 = arith.divf %29, %30 : vector<8x128xf32>
    %32 = vector.extract_strided_slice %19 {offsets = [0, 256], sizes = [8, 128], strides = [1, 1]} : vector<8x512xf32> to vector<8x128xf32>
    %33 = math.tanh %32 : vector<8x128xf32>
    %34 = vector.extract_strided_slice %19 {offsets = [0, 384], sizes = [8, 128], strides = [1, 1]} : vector<8x512xf32> to vector<8x128xf32>
    %35 = arith.negf %34 : vector<8x128xf32>
    %36 = math.exp %35 : vector<8x128xf32>
    %cst_21 = arith.constant 1.000000e+00 : f32
    %37 = vector.broadcast %cst_21 : f32 to vector<8x128xf32>
    %38 = arith.addf %37, %36 : vector<8x128xf32>
    %39 = arith.divf %37, %38 : vector<8x128xf32>
    %40 = arith.mulf %31, %12 : vector<8x128xf32>
    %41 = arith.mulf %25, %33 : vector<8x128xf32>
    %42 = arith.addf %40, %41 : vector<8x128xf32>
    %43 = math.tanh %42 : vector<8x128xf32>
    %44 = arith.mulf %39, %43 : vector<8x128xf32>
    %c1_i32 = arith.constant 1 : i32
    %c8_i32_22 = arith.constant 8 : i32
    %45 = arith.muli %c1_i32, %c8_i32_22 : i32
    %46 = tpu.assume_multiple %45, 8 : i32
    %47 = arith.index_cast %46 : i32 to index
    %c0_23 = arith.constant 0 : index
    %48 = vector.load %arg9[%47, %c0_23] : memref<64x512xf32, #tpu.memory_space<vmem>>, vector<8x512xf32>
    %c0_24 = arith.constant 0 : index
    %c0_25 = arith.constant 0 : index
    %49 = vector.load %arg4[%c0_24, %c0_25] : memref<128x512xf32, #tpu.memory_space<vmem>>, vector<128x512xf32>
    %cst_26 = arith.constant dense<0.000000e+00> : vector<8x512xf32>
    %50 = tpu.matmul %44, %49, %cst_26 {dimension_numbers = #tpu.dot_dimension_numbers<[1], [0], [0], [1], [0, 0, 1, 1], [], []>} : vector<8x128xf32>, vector<128x512xf32>, vector<8x512xf32> -> vector<8x512xf32>
    %51 = arith.addf %48, %50 : vector<8x512xf32>
    %52 = vector.extract_strided_slice %51 {offsets = [0, 0], sizes = [8, 128], strides = [1, 1]} : vector<8x512xf32> to vector<8x128xf32>
    %53 = arith.negf %52 : vector<8x128xf32>
    %54 = math.exp %53 : vector<8x128xf32>
    %cst_27 = arith.constant 1.000000e+00 : f32
    %55 = vector.broadcast %cst_27 : f32 to vector<8x128xf32>
    %56 = arith.addf %55, %54 : vector<8x128xf32>
    %57 = arith.divf %55, %56 : vector<8x128xf32>
    %58 = vector.extract_strided_slice %51 {offsets = [0, 128], sizes = [8, 128], strides = [1, 1]} : vector<8x512xf32> to vector<8x128xf32>
    %59 = arith.negf %58 : vector<8x128xf32>
    %60 = math.exp %59 : vector<8x128xf32>
    %cst_28 = arith.constant 1.000000e+00 : f32
    %61 = vector.broadcast %cst_28 : f32 to vector<8x128xf32>
    %62 = arith.addf %61, %60 : vector<8x128xf32>
    %63 = arith.divf %61, %62 : vector<8x128xf32>
    %64 = vector.extract_strided_slice %51 {offsets = [0, 256], sizes = [8, 128], strides = [1, 1]} : vector<8x512xf32> to vector<8x128xf32>
    %65 = math.tanh %64 : vector<8x128xf32>
    %66 = vector.extract_strided_slice %51 {offsets = [0, 384], sizes = [8, 128], strides = [1, 1]} : vector<8x512xf32> to vector<8x128xf32>
    %67 = arith.negf %66 : vector<8x128xf32>
    %68 = math.exp %67 : vector<8x128xf32>
    %cst_29 = arith.constant 1.000000e+00 : f32
    %69 = vector.broadcast %cst_29 : f32 to vector<8x128xf32>
    %70 = arith.addf %69, %68 : vector<8x128xf32>
    %71 = arith.divf %69, %70 : vector<8x128xf32>
    %72 = arith.mulf %63, %42 : vector<8x128xf32>
    %73 = arith.mulf %57, %65 : vector<8x128xf32>
    %74 = arith.addf %72, %73 : vector<8x128xf32>
    %75 = math.tanh %74 : vector<8x128xf32>
    %76 = arith.mulf %71, %75 : vector<8x128xf32>
    %c2_i32 = arith.constant 2 : i32
    %c8_i32_30 = arith.constant 8 : i32
    %77 = arith.muli %c2_i32, %c8_i32_30 : i32
    %78 = tpu.assume_multiple %77, 8 : i32
    %79 = arith.index_cast %78 : i32 to index
    %c0_31 = arith.constant 0 : index
    %80 = vector.load %arg9[%79, %c0_31] : memref<64x512xf32, #tpu.memory_space<vmem>>, vector<8x512xf32>
    %c0_32 = arith.constant 0 : index
    %c0_33 = arith.constant 0 : index
    %81 = vector.load %arg4[%c0_32, %c0_33] : memref<128x512xf32, #tpu.memory_space<vmem>>, vector<128x512xf32>
    %cst_34 = arith.constant dense<0.000000e+00> : vector<8x512xf32>
    %82 = tpu.matmul %76, %81, %cst_34 {dimension_numbers = #tpu.dot_dimension_numbers<[1], [0], [0], [1], [0, 0, 1, 1], [], []>} : vector<8x128xf32>, vector<128x512xf32>, vector<8x512xf32> -> vector<8x512xf32>
    %83 = arith.addf %80, %82 : vector<8x512xf32>
    %84 = vector.extract_strided_slice %83 {offsets = [0, 0], sizes = [8, 128], strides = [1, 1]} : vector<8x512xf32> to vector<8x128xf32>
    %85 = arith.negf %84 : vector<8x128xf32>
    %86 = math.exp %85 : vector<8x128xf32>
    %cst_35 = arith.constant 1.000000e+00 : f32
    %87 = vector.broadcast %cst_35 : f32 to vector<8x128xf32>
    %88 = arith.addf %87, %86 : vector<8x128xf32>
    %89 = arith.divf %87, %88 : vector<8x128xf32>
    %90 = vector.extract_strided_slice %83 {offsets = [0, 128], sizes = [8, 128], strides = [1, 1]} : vector<8x512xf32> to vector<8x128xf32>
    %91 = arith.negf %90 : vector<8x128xf32>
    %92 = math.exp %91 : vector<8x128xf32>
    %cst_36 = arith.constant 1.000000e+00 : f32
    %93 = vector.broadcast %cst_36 : f32 to vector<8x128xf32>
    %94 = arith.addf %93, %92 : vector<8x128xf32>
    %95 = arith.divf %93, %94 : vector<8x128xf32>
    %96 = vector.extract_strided_slice %83 {offsets = [0, 256], sizes = [8, 128], strides = [1, 1]} : vector<8x512xf32> to vector<8x128xf32>
    %97 = math.tanh %96 : vector<8x128xf32>
    %98 = vector.extract_strided_slice %83 {offsets = [0, 384], sizes = [8, 128], strides = [1, 1]} : vector<8x512xf32> to vector<8x128xf32>
    %99 = arith.negf %98 : vector<8x128xf32>
    %100 = math.exp %99 : vector<8x128xf32>
    %cst_37 = arith.constant 1.000000e+00 : f32
    %101 = vector.broadcast %cst_37 : f32 to vector<8x128xf32>
    %102 = arith.addf %101, %100 : vector<8x128xf32>
    %103 = arith.divf %101, %102 : vector<8x128xf32>
    %104 = arith.mulf %95, %74 : vector<8x128xf32>
    %105 = arith.mulf %89, %97 : vector<8x128xf32>
    %106 = arith.addf %104, %105 : vector<8x128xf32>
    %107 = math.tanh %106 : vector<8x128xf32>
    %108 = arith.mulf %103, %107 : vector<8x128xf32>
    %c3_i32 = arith.constant 3 : i32
    %c8_i32_38 = arith.constant 8 : i32
    %109 = arith.muli %c3_i32, %c8_i32_38 : i32
    %110 = tpu.assume_multiple %109, 8 : i32
    %111 = arith.index_cast %110 : i32 to index
    %c0_39 = arith.constant 0 : index
    %112 = vector.load %arg9[%111, %c0_39] : memref<64x512xf32, #tpu.memory_space<vmem>>, vector<8x512xf32>
    %c0_40 = arith.constant 0 : index
    %c0_41 = arith.constant 0 : index
    %113 = vector.load %arg4[%c0_40, %c0_41] : memref<128x512xf32, #tpu.memory_space<vmem>>, vector<128x512xf32>
    %cst_42 = arith.constant dense<0.000000e+00> : vector<8x512xf32>
    %114 = tpu.matmul %108, %113, %cst_42 {dimension_numbers = #tpu.dot_dimension_numbers<[1], [0], [0], [1], [0, 0, 1, 1], [], []>} : vector<8x128xf32>, vector<128x512xf32>, vector<8x512xf32> -> vector<8x512xf32>
    %115 = arith.addf %112, %114 : vector<8x512xf32>
    %116 = vector.extract_strided_slice %115 {offsets = [0, 0], sizes = [8, 128], strides = [1, 1]} : vector<8x512xf32> to vector<8x128xf32>
    %117 = arith.negf %116 : vector<8x128xf32>
    %118 = math.exp %117 : vector<8x128xf32>
    %cst_43 = arith.constant 1.000000e+00 : f32
    %119 = vector.broadcast %cst_43 : f32 to vector<8x128xf32>
    %120 = arith.addf %119, %118 : vector<8x128xf32>
    %121 = arith.divf %119, %120 : vector<8x128xf32>
    %122 = vector.extract_strided_slice %115 {offsets = [0, 128], sizes = [8, 128], strides = [1, 1]} : vector<8x512xf32> to vector<8x128xf32>
    %123 = arith.negf %122 : vector<8x128xf32>
    %124 = math.exp %123 : vector<8x128xf32>
    %cst_44 = arith.constant 1.000000e+00 : f32
    %125 = vector.broadcast %cst_44 : f32 to vector<8x128xf32>
    %126 = arith.addf %125, %124 : vector<8x128xf32>
    %127 = arith.divf %125, %126 : vector<8x128xf32>
    %128 = vector.extract_strided_slice %115 {offsets = [0, 256], sizes = [8, 128], strides = [1, 1]} : vector<8x512xf32> to vector<8x128xf32>
    %129 = math.tanh %128 : vector<8x128xf32>
    %130 = vector.extract_strided_slice %115 {offsets = [0, 384], sizes = [8, 128], strides = [1, 1]} : vector<8x512xf32> to vector<8x128xf32>
    %131 = arith.negf %130 : vector<8x128xf32>
    %132 = math.exp %131 : vector<8x128xf32>
    %cst_45 = arith.constant 1.000000e+00 : f32
    %133 = vector.broadcast %cst_45 : f32 to vector<8x128xf32>
    %134 = arith.addf %133, %132 : vector<8x128xf32>
    %135 = arith.divf %133, %134 : vector<8x128xf32>
    %136 = arith.mulf %127, %106 : vector<8x128xf32>
    %137 = arith.mulf %121, %129 : vector<8x128xf32>
    %138 = arith.addf %136, %137 : vector<8x128xf32>
    %139 = math.tanh %138 : vector<8x128xf32>
    %140 = arith.mulf %135, %139 : vector<8x128xf32>
    %c4_i32 = arith.constant 4 : i32
    %c8_i32_46 = arith.constant 8 : i32
    %141 = arith.muli %c4_i32, %c8_i32_46 : i32
    %142 = tpu.assume_multiple %141, 8 : i32
    %143 = arith.index_cast %142 : i32 to index
    %c0_47 = arith.constant 0 : index
    %144 = vector.load %arg9[%143, %c0_47] : memref<64x512xf32, #tpu.memory_space<vmem>>, vector<8x512xf32>
    %c0_48 = arith.constant 0 : index
    %c0_49 = arith.constant 0 : index
    %145 = vector.load %arg4[%c0_48, %c0_49] : memref<128x512xf32, #tpu.memory_space<vmem>>, vector<128x512xf32>
    %cst_50 = arith.constant dense<0.000000e+00> : vector<8x512xf32>
    %146 = tpu.matmul %140, %145, %cst_50 {dimension_numbers = #tpu.dot_dimension_numbers<[1], [0], [0], [1], [0, 0, 1, 1], [], []>} : vector<8x128xf32>, vector<128x512xf32>, vector<8x512xf32> -> vector<8x512xf32>
    %147 = arith.addf %144, %146 : vector<8x512xf32>
    %148 = vector.extract_strided_slice %147 {offsets = [0, 0], sizes = [8, 128], strides = [1, 1]} : vector<8x512xf32> to vector<8x128xf32>
    %149 = arith.negf %148 : vector<8x128xf32>
    %150 = math.exp %149 : vector<8x128xf32>
    %cst_51 = arith.constant 1.000000e+00 : f32
    %151 = vector.broadcast %cst_51 : f32 to vector<8x128xf32>
    %152 = arith.addf %151, %150 : vector<8x128xf32>
    %153 = arith.divf %151, %152 : vector<8x128xf32>
    %154 = vector.extract_strided_slice %147 {offsets = [0, 128], sizes = [8, 128], strides = [1, 1]} : vector<8x512xf32> to vector<8x128xf32>
    %155 = arith.negf %154 : vector<8x128xf32>
    %156 = math.exp %155 : vector<8x128xf32>
    %cst_52 = arith.constant 1.000000e+00 : f32
    %157 = vector.broadcast %cst_52 : f32 to vector<8x128xf32>
    %158 = arith.addf %157, %156 : vector<8x128xf32>
    %159 = arith.divf %157, %158 : vector<8x128xf32>
    %160 = vector.extract_strided_slice %147 {offsets = [0, 256], sizes = [8, 128], strides = [1, 1]} : vector<8x512xf32> to vector<8x128xf32>
    %161 = math.tanh %160 : vector<8x128xf32>
    %162 = vector.extract_strided_slice %147 {offsets = [0, 384], sizes = [8, 128], strides = [1, 1]} : vector<8x512xf32> to vector<8x128xf32>
    %163 = arith.negf %162 : vector<8x128xf32>
    %164 = math.exp %163 : vector<8x128xf32>
    %cst_53 = arith.constant 1.000000e+00 : f32
    %165 = vector.broadcast %cst_53 : f32 to vector<8x128xf32>
    %166 = arith.addf %165, %164 : vector<8x128xf32>
    %167 = arith.divf %165, %166 : vector<8x128xf32>
    %168 = arith.mulf %159, %138 : vector<8x128xf32>
    %169 = arith.mulf %153, %161 : vector<8x128xf32>
    %170 = arith.addf %168, %169 : vector<8x128xf32>
    %171 = math.tanh %170 : vector<8x128xf32>
    %172 = arith.mulf %167, %171 : vector<8x128xf32>
    %c5_i32 = arith.constant 5 : i32
    %c8_i32_54 = arith.constant 8 : i32
    %173 = arith.muli %c5_i32, %c8_i32_54 : i32
    %174 = tpu.assume_multiple %173, 8 : i32
    %175 = arith.index_cast %174 : i32 to index
    %c0_55 = arith.constant 0 : index
    %176 = vector.load %arg9[%175, %c0_55] : memref<64x512xf32, #tpu.memory_space<vmem>>, vector<8x512xf32>
    %c0_56 = arith.constant 0 : index
    %c0_57 = arith.constant 0 : index
    %177 = vector.load %arg4[%c0_56, %c0_57] : memref<128x512xf32, #tpu.memory_space<vmem>>, vector<128x512xf32>
    %cst_58 = arith.constant dense<0.000000e+00> : vector<8x512xf32>
    %178 = tpu.matmul %172, %177, %cst_58 {dimension_numbers = #tpu.dot_dimension_numbers<[1], [0], [0], [1], [0, 0, 1, 1], [], []>} : vector<8x128xf32>, vector<128x512xf32>, vector<8x512xf32> -> vector<8x512xf32>
    %179 = arith.addf %176, %178 : vector<8x512xf32>
    %180 = vector.extract_strided_slice %179 {offsets = [0, 0], sizes = [8, 128], strides = [1, 1]} : vector<8x512xf32> to vector<8x128xf32>
    %181 = arith.negf %180 : vector<8x128xf32>
    %182 = math.exp %181 : vector<8x128xf32>
    %cst_59 = arith.constant 1.000000e+00 : f32
    %183 = vector.broadcast %cst_59 : f32 to vector<8x128xf32>
    %184 = arith.addf %183, %182 : vector<8x128xf32>
    %185 = arith.divf %183, %184 : vector<8x128xf32>
    %186 = vector.extract_strided_slice %179 {offsets = [0, 128], sizes = [8, 128], strides = [1, 1]} : vector<8x512xf32> to vector<8x128xf32>
    %187 = arith.negf %186 : vector<8x128xf32>
    %188 = math.exp %187 : vector<8x128xf32>
    %cst_60 = arith.constant 1.000000e+00 : f32
    %189 = vector.broadcast %cst_60 : f32 to vector<8x128xf32>
    %190 = arith.addf %189, %188 : vector<8x128xf32>
    %191 = arith.divf %189, %190 : vector<8x128xf32>
    %192 = vector.extract_strided_slice %179 {offsets = [0, 256], sizes = [8, 128], strides = [1, 1]} : vector<8x512xf32> to vector<8x128xf32>
    %193 = math.tanh %192 : vector<8x128xf32>
    %194 = vector.extract_strided_slice %179 {offsets = [0, 384], sizes = [8, 128], strides = [1, 1]} : vector<8x512xf32> to vector<8x128xf32>
    %195 = arith.negf %194 : vector<8x128xf32>
    %196 = math.exp %195 : vector<8x128xf32>
    %cst_61 = arith.constant 1.000000e+00 : f32
    %197 = vector.broadcast %cst_61 : f32 to vector<8x128xf32>
    %198 = arith.addf %197, %196 : vector<8x128xf32>
    %199 = arith.divf %197, %198 : vector<8x128xf32>
    %200 = arith.mulf %191, %170 : vector<8x128xf32>
    %201 = arith.mulf %185, %193 : vector<8x128xf32>
    %202 = arith.addf %200, %201 : vector<8x128xf32>
    %203 = math.tanh %202 : vector<8x128xf32>
    %204 = arith.mulf %199, %203 : vector<8x128xf32>
    %c6_i32 = arith.constant 6 : i32
    %c8_i32_62 = arith.constant 8 : i32
    %205 = arith.muli %c6_i32, %c8_i32_62 : i32
    %206 = tpu.assume_multiple %205, 8 : i32
    %207 = arith.index_cast %206 : i32 to index
    %c0_63 = arith.constant 0 : index
    %208 = vector.load %arg9[%207, %c0_63] : memref<64x512xf32, #tpu.memory_space<vmem>>, vector<8x512xf32>
    %c0_64 = arith.constant 0 : index
    %c0_65 = arith.constant 0 : index
    %209 = vector.load %arg4[%c0_64, %c0_65] : memref<128x512xf32, #tpu.memory_space<vmem>>, vector<128x512xf32>
    %cst_66 = arith.constant dense<0.000000e+00> : vector<8x512xf32>
    %210 = tpu.matmul %204, %209, %cst_66 {dimension_numbers = #tpu.dot_dimension_numbers<[1], [0], [0], [1], [0, 0, 1, 1], [], []>} : vector<8x128xf32>, vector<128x512xf32>, vector<8x512xf32> -> vector<8x512xf32>
    %211 = arith.addf %208, %210 : vector<8x512xf32>
    %212 = vector.extract_strided_slice %211 {offsets = [0, 0], sizes = [8, 128], strides = [1, 1]} : vector<8x512xf32> to vector<8x128xf32>
    %213 = arith.negf %212 : vector<8x128xf32>
    %214 = math.exp %213 : vector<8x128xf32>
    %cst_67 = arith.constant 1.000000e+00 : f32
    %215 = vector.broadcast %cst_67 : f32 to vector<8x128xf32>
    %216 = arith.addf %215, %214 : vector<8x128xf32>
    %217 = arith.divf %215, %216 : vector<8x128xf32>
    %218 = vector.extract_strided_slice %211 {offsets = [0, 128], sizes = [8, 128], strides = [1, 1]} : vector<8x512xf32> to vector<8x128xf32>
    %219 = arith.negf %218 : vector<8x128xf32>
    %220 = math.exp %219 : vector<8x128xf32>
    %cst_68 = arith.constant 1.000000e+00 : f32
    %221 = vector.broadcast %cst_68 : f32 to vector<8x128xf32>
    %222 = arith.addf %221, %220 : vector<8x128xf32>
    %223 = arith.divf %221, %222 : vector<8x128xf32>
    %224 = vector.extract_strided_slice %211 {offsets = [0, 256], sizes = [8, 128], strides = [1, 1]} : vector<8x512xf32> to vector<8x128xf32>
    %225 = math.tanh %224 : vector<8x128xf32>
    %226 = vector.extract_strided_slice %211 {offsets = [0, 384], sizes = [8, 128], strides = [1, 1]} : vector<8x512xf32> to vector<8x128xf32>
    %227 = arith.negf %226 : vector<8x128xf32>
    %228 = math.exp %227 : vector<8x128xf32>
    %cst_69 = arith.constant 1.000000e+00 : f32
    %229 = vector.broadcast %cst_69 : f32 to vector<8x128xf32>
    %230 = arith.addf %229, %228 : vector<8x128xf32>
    %231 = arith.divf %229, %230 : vector<8x128xf32>
    %232 = arith.mulf %223, %202 : vector<8x128xf32>
    %233 = arith.mulf %217, %225 : vector<8x128xf32>
    %234 = arith.addf %232, %233 : vector<8x128xf32>
    %235 = math.tanh %234 : vector<8x128xf32>
    %236 = arith.mulf %231, %235 : vector<8x128xf32>
    %c7_i32 = arith.constant 7 : i32
    %c8_i32_70 = arith.constant 8 : i32
    %237 = arith.muli %c7_i32, %c8_i32_70 : i32
    %238 = tpu.assume_multiple %237, 8 : i32
    %239 = arith.index_cast %238 : i32 to index
    %c0_71 = arith.constant 0 : index
    %240 = vector.load %arg9[%239, %c0_71] : memref<64x512xf32, #tpu.memory_space<vmem>>, vector<8x512xf32>
    %c0_72 = arith.constant 0 : index
    %c0_73 = arith.constant 0 : index
    %241 = vector.load %arg4[%c0_72, %c0_73] : memref<128x512xf32, #tpu.memory_space<vmem>>, vector<128x512xf32>
    %cst_74 = arith.constant dense<0.000000e+00> : vector<8x512xf32>
    %242 = tpu.matmul %236, %241, %cst_74 {dimension_numbers = #tpu.dot_dimension_numbers<[1], [0], [0], [1], [0, 0, 1, 1], [], []>} : vector<8x128xf32>, vector<128x512xf32>, vector<8x512xf32> -> vector<8x512xf32>
    %243 = arith.addf %240, %242 : vector<8x512xf32>
    %244 = vector.extract_strided_slice %243 {offsets = [0, 0], sizes = [8, 128], strides = [1, 1]} : vector<8x512xf32> to vector<8x128xf32>
    %245 = arith.negf %244 : vector<8x128xf32>
    %246 = math.exp %245 : vector<8x128xf32>
    %cst_75 = arith.constant 1.000000e+00 : f32
    %247 = vector.broadcast %cst_75 : f32 to vector<8x128xf32>
    %248 = arith.addf %247, %246 : vector<8x128xf32>
    %249 = arith.divf %247, %248 : vector<8x128xf32>
    %250 = vector.extract_strided_slice %243 {offsets = [0, 128], sizes = [8, 128], strides = [1, 1]} : vector<8x512xf32> to vector<8x128xf32>
    %251 = arith.negf %250 : vector<8x128xf32>
    %252 = math.exp %251 : vector<8x128xf32>
    %cst_76 = arith.constant 1.000000e+00 : f32
    %253 = vector.broadcast %cst_76 : f32 to vector<8x128xf32>
    %254 = arith.addf %253, %252 : vector<8x128xf32>
    %255 = arith.divf %253, %254 : vector<8x128xf32>
    %256 = vector.extract_strided_slice %243 {offsets = [0, 256], sizes = [8, 128], strides = [1, 1]} : vector<8x512xf32> to vector<8x128xf32>
    %257 = math.tanh %256 : vector<8x128xf32>
    %258 = vector.extract_strided_slice %243 {offsets = [0, 384], sizes = [8, 128], strides = [1, 1]} : vector<8x512xf32> to vector<8x128xf32>
    %259 = arith.negf %258 : vector<8x128xf32>
    %260 = math.exp %259 : vector<8x128xf32>
    %cst_77 = arith.constant 1.000000e+00 : f32
    %261 = vector.broadcast %cst_77 : f32 to vector<8x128xf32>
    %262 = arith.addf %261, %260 : vector<8x128xf32>
    %263 = arith.divf %261, %262 : vector<8x128xf32>
    %264 = arith.mulf %255, %234 : vector<8x128xf32>
    %265 = arith.mulf %249, %257 : vector<8x128xf32>
    %266 = arith.addf %264, %265 : vector<8x128xf32>
    %267 = math.tanh %266 : vector<8x128xf32>
    %268 = arith.mulf %263, %267 : vector<8x128xf32>
    %c8_i32_78 = arith.constant 8 : i32
    %c0_79 = arith.constant 0 : index
    %c0_80 = arith.constant 0 : index
    %269 = vector.load %arg10[%c0_79, %c0_80] : memref<8x128xf32, #tpu.memory_space<vmem>>, vector<8x128xf32>
    tpu.vector_store %arg10[%c0_79, %c0_80], %268 {strides = array<i32>} : memref<8x128xf32, #tpu.memory_space<vmem>>, vector<8x128xf32>,
    %c0_81 = arith.constant 0 : index
    %c0_82 = arith.constant 0 : index
    %270 = vector.load %arg11[%c0_81, %c0_82] : memref<8x128xf32, #tpu.memory_space<vmem>>, vector<8x128xf32>
    tpu.vector_store %arg11[%c0_81, %c0_82], %266 {strides = array<i32>} : memref<8x128xf32, #tpu.memory_space<vmem>>, vector<8x128xf32>,
    %c0_i32_83 = arith.constant 0 : i32
    %271 = arith.cmpi eq, %arg1, %c0_i32_83 : i32
    %272 = arith.extui %271 : i1 to i32
    %c0_i32_84 = arith.constant 0 : i32
    %273 = arith.cmpi ne, %272, %c0_i32_84 : i32
    scf.if %273 {
      %c0_85 = arith.constant 0 : index
      %c0_86 = arith.constant 0 : index
      %274 = vector.load %arg6[%c0_85, %c0_86] : memref<128x128xf32, #tpu.memory_space<vmem>>, vector<128x128xf32>
      %cst_87 = arith.constant dense<0.000000e+00> : vector<8x128xf32>
      %275 = tpu.matmul %268, %274, %cst_87 {dimension_numbers = #tpu.dot_dimension_numbers<[1], [0], [0], [1], [0, 0, 1, 1], [], []>} : vector<8x128xf32>, vector<128x128xf32>, vector<8x128xf32> -> vector<8x128xf32>
      %c0_88 = arith.constant 0 : index
      %c0_89 = arith.constant 0 : index
      %276 = vector.load %arg7[%c0_88, %c0_89] : memref<1x128xf32, #tpu.memory_space<vmem>>, vector<1x128xf32>
      %277 = vector.broadcast %276 : vector<1x128xf32> to vector<8x128xf32>
      %278 = arith.addf %275, %277 : vector<8x128xf32>
      %c0_90 = arith.constant 0 : index
      %c0_91 = arith.constant 0 : index
      %279 = vector.load %arg8[%c0_90, %c0_91] : memref<8x128xf32, #tpu.memory_space<vmem>>, vector<8x128xf32>
      tpu.vector_store %arg8[%c0_90, %c0_91], %278 {strides = array<i32>} : memref<8x128xf32, #tpu.memory_space<vmem>>, vector<8x128xf32>,
    } else {
    }
    return
  }
  func.func @transform_0(%arg0: i32, %arg1: i32) -> (i32, i32, i32, i32) {
    %c0_i32 = arith.constant 0 : i32
    %c0_i32_0 = arith.constant 0 : i32
    %c0_i32_1 = arith.constant 0 : i32
    return %arg0, %arg1, %c0_i32, %c0_i32_0 : i32, i32, i32, i32
  }
  func.func @transform_1(%arg0: i32, %arg1: i32) -> (i32, i32) {
    %c0_i32 = arith.constant 0 : i32
    %c0_i32_0 = arith.constant 0 : i32
    %c0_i32_1 = arith.constant 0 : i32
    return %c0_i32, %c0_i32_0 : i32, i32
  }
  func.func @transform_2(%arg0: i32, %arg1: i32) -> (i32, i32) {
    %c0_i32 = arith.constant 0 : i32
    %c0_i32_0 = arith.constant 0 : i32
    %c0_i32_1 = arith.constant 0 : i32
    return %c0_i32, %c0_i32_0 : i32, i32
  }
  func.func @transform_3(%arg0: i32, %arg1: i32) -> (i32, i32) {
    %c0_i32 = arith.constant 0 : i32
    %c0_i32_0 = arith.constant 0 : i32
    %c0_i32_1 = arith.constant 0 : i32
    return %c0_i32, %c0_i32_0 : i32, i32
  }
  func.func @transform_4(%arg0: i32, %arg1: i32) -> (i32, i32) {
    %c0_i32 = arith.constant 0 : i32
    %c0_i32_0 = arith.constant 0 : i32
    %c0_i32_1 = arith.constant 0 : i32
    return %c0_i32, %c0_i32_0 : i32, i32
  }
  func.func @transform_5(%arg0: i32, %arg1: i32) -> (i32, i32) {
    %c0_i32 = arith.constant 0 : i32
    %c0_i32_0 = arith.constant 0 : i32
    %c0_i32_1 = arith.constant 0 : i32
    return %c0_i32, %c0_i32_0 : i32, i32
  }
  func.func @transform_6(%arg0: i32, %arg1: i32) -> (i32, i32) {
    %c0_i32 = arith.constant 0 : i32
    %c0_i32_0 = arith.constant 0 : i32
    return %arg0, %c0_i32 : i32, i32
  }
}

</mosaic_0001>

<llo_original>
// kernel: tpu_custom_call.1
$region0: #{tpu_custom_call.1}
  #allocation0 [shape = 'u32[]', space=smem, size = 0x4, offset = 0x4, fixed_abs, tag = 'smem constant byte address 0x4 - core index']
  #allocation1 [shape = 'u32[72,128]{1,0:T(1,128)}', space=vmem, size = 0x9000, scoped, tag = 'internal scratch']
  #allocation2 [shape = 'f32[64,512]{1,0:T(8,128)}', space=vmem, size = 0x20000, scoped, tag = 'scratch operand']
  #allocation3 [shape = 'f32[8,128]{1,0:T(8,128)}', space=vmem, size = 0x1000, scoped, tag = 'scratch operand']
  #allocation4 [shape = 'f32[8,128]{1,0:T(8,128)}', space=vmem, size = 0x1000, scoped, tag = 'scratch operand']
  %s0 = inlined_call_operand.vmem [shape: f32[1,1,64,32], index: 0, kind: input, shape index: {}]
  %s1 = inlined_call_operand.hbm [shape: f32[32,512], index: 1, kind: input, shape index: {}]
  %s2 = inlined_call_operand.hbm [shape: f32[128,512], index: 2, kind: input, shape index: {}]
  %s3 = inlined_call_operand.vmem [shape: f32[1,512], index: 3, kind: input, shape index: {}]
  %s4 = inlined_call_operand.hbm [shape: f32[128,128], index: 4, kind: input, shape index: {}]
  %s5 = inlined_call_operand.vmem [shape: f32[1,128], index: 5, kind: input, shape index: {}]
  %s6 = inlined_call_operand.hbm [shape: f32[8,128], index: 6, kind: output, shape index: {}]
  %s7 = sld [smem:[#allocation0]]
  $region54: #{tpu_custom_call.1} parent=0
    _
  %s9 = ssub.s32 1, %s7
  %s10 = scalar_select 0, %s9, %s7
  $region1: #{tpu_custom_call.1} parent=0
    #allocation5 [shape = 'u8[65536]{0}', space=vmem, size = 0x10000, scoped, tag = 'input window, operand 1, single buffered']
    #allocation6 [shape = 's32[1]{0}', space=sflag, size = 0x4, scoped, tag = 'scoped memory for tpu_custom_call.1']
    #allocation7 [shape = 's32[1]{0}', space=sflag, size = 0x4, scoped, tag = 'scoped memory for tpu_custom_call.1']
    #allocation8 [shape = 'u8[262144]{0}', space=vmem, size = 0x40000, scoped, tag = 'input window, operand 2, single buffered']
    #allocation9 [shape = 's32[1]{0}', space=sflag, size = 0x4, scoped, tag = 'scoped memory for tpu_custom_call.1']
    #allocation10 [shape = 'u8[65536]{0}', space=vmem, size = 0x10000, scoped, tag = 'input window, operand 4, single buffered']
    #allocation11 [shape = 'u8[4096]{0}', space=vmem, size = 0x1000, scoped, tag = 'output window, operand 0, single buffered']
    %11 = vsyncpa [#allocation6], 0
    %12 = vsyncpa [#allocation9], 0
    %13 = vsyncpa [#allocation7], 0
    // Predicated region
    $region2: #{tpu_custom_call.1} parent=1 // pred_check
      _
    $region3: #{tpu_custom_call.1} parent=1 // pred_check_branch
      %15 = sbr.rel (0) target = $region5
    $region4: #{tpu_custom_call.1} parent=1 // pred_region
      _
    $region5: #{tpu_custom_call.1} parent=1 // pred_fallthru
      _
    // Predicated region
    $region6: #{tpu_custom_call.1} parent=1 // pred_check
      _
    $region7: #{tpu_custom_call.1} parent=1 // pred_check_branch
      %17 = sbr.rel (0) target = $region9
    $region8: #{tpu_custom_call.1} parent=1 // pred_region
      %19 = vsyncadd [#allocation6], 0
      %s20 = sshll.u32 %s1, 4
      %s21 = int_to_ptr.hbm [resolvable:$true] %s20
      %s22 = sshll.u32 [#allocation5], 4
      %s23 = int_to_ptr.vmem [resolvable:$true] %s22
      %28 = dma.hbm_to_vmem [thread:$0]  %s21, 2048, %s23, [#allocation6], 512, 512, 32
    $region9: #{tpu_custom_call.1} parent=1 // pred_fallthru
      _
    // Predicated region
    $region10: #{tpu_custom_call.1} parent=1 // pred_check
      _
    $region11: #{tpu_custom_call.1} parent=1 // pred_check_branch
      %30 = sbr.rel (0) target = $region13
    $region12: #{tpu_custom_call.1} parent=1 // pred_region
      %32 = vsyncadd [#allocation9], 0
      %s33 = sshll.u32 %s2, 4
      %s34 = int_to_ptr.hbm [resolvable:$true] %s33
      %s35 = sshll.u32 [#allocation8], 4
      %s36 = int_to_ptr.vmem [resolvable:$true] %s35
      %41 = dma.hbm_to_vmem [thread:$0]  %s34, 8192, %s36, [#allocation9], 512, 512, 32
    $region13: #{tpu_custom_call.1} parent=1 // pred_fallthru
      _
    // Predicated region
    $region14: #{tpu_custom_call.1} parent=1 // pred_check
      _
    $region15: #{tpu_custom_call.1} parent=1 // pred_check_branch
      %43 = sbr.rel (0) target = $region17
    $region16: #{tpu_custom_call.1} parent=1 // pred_region
      _
    $region17: #{tpu_custom_call.1} parent=1 // pred_fallthru
      _
    // Predicated region
    $region18: #{tpu_custom_call.1} parent=1 // pred_check
      _
    $region19: #{tpu_custom_call.1} parent=1 // pred_check_branch
      %45 = sbr.rel (0) target = $region21
    $region20: #{tpu_custom_call.1} parent=1 // pred_region
      %47 = vsyncadd [#allocation9], 0
      %s48 = sshll.u32 %s4, 4
      %s49 = int_to_ptr.hbm [resolvable:$true] %s48
      %s50 = sshll.u32 [#allocation10], 4
      %s51 = int_to_ptr.vmem [resolvable:$true] %s50
      %56 = dma.hbm_to_vmem [thread:$0]  %s49, 2048, %s51, [#allocation9], 128, 128, 8
    $region21: #{tpu_custom_call.1} parent=1 // pred_fallthru
      _
    // Predicated region
    $region22: #{tpu_custom_call.1} parent=1 // pred_check
      _
    $region23: #{tpu_custom_call.1} parent=1 // pred_check_branch
      %58 = sbr.rel (0) target = $region25
    $region24: #{tpu_custom_call.1} parent=1 // pred_region
      _
    $region25: #{tpu_custom_call.1} parent=1 // pred_fallthru
      _
    // Predicated region
    $region26: #{tpu_custom_call.1} parent=1 // pred_check
      _
    $region27: #{tpu_custom_call.1} parent=1 // pred_check_branch
      %60 = sbr.rel (0) target = $region29
    $region28: #{tpu_custom_call.1} parent=1 // pred_region
      %62 = dma.done [#allocation6], 2048
    $region29: #{tpu_custom_call.1} parent=1 // pred_fallthru
      _
    // Predicated region
    $region30: #{tpu_custom_call.1} parent=1 // pred_check
      _
    $region31: #{tpu_custom_call.1} parent=1 // pred_check_branch
      %64 = sbr.rel (0) target = $region33
    $region32: #{tpu_custom_call.1} parent=1 // pred_region
      %66 = dma.done [#allocation9], 8192
    $region33: #{tpu_custom_call.1} parent=1 // pred_fallthru
      _
    // Predicated region
    $region34: #{tpu_custom_call.1} parent=1 // pred_check
      _
    $region35: #{tpu_custom_call.1} parent=1 // pred_check_branch
      %68 = sbr.rel (0) target = $region37
    $region36: #{tpu_custom_call.1} parent=1 // pred_region
      %70 = dma.done [#allocation9], 2048
    $region37: #{tpu_custom_call.1} parent=1 // pred_fallthru
      _
    %p71 = scmp.eq.s32.totalorder 0, 0
    // Predicated region
    $region38: #{tpu_custom_call.1} parent=1 // pred_check
      %p72 = pneg %p71
    $region39: #{tpu_custom_call.1} parent=1 // pred_check_branch
      %74 = sbr.rel (%p72) target = $region41
    $region40: #{tpu_custom_call.1} parent=1 // pred_region
      %75 = vst [vmem:[#allocation3] sm:$0xff] 0.0
      %76 = vst [vmem:[#allocation4] sm:$0xff] 0.0
    $region41: #{tpu_custom_call.1} parent=1 // pred_fallthru
      _
    %v77 = vld [vmem:[%s0] sm:$0xff]
    %v78 = vld [vmem:[%s0 + $0x8] sm:$0xff]
    %v79 = vld [vmem:[%s0 + $0x10] sm:$0xff]
    %v80 = vld [vmem:[%s0 + $0x18] sm:$0xff]
    %v81 = vld [vmem:[%s0 + $0x20] sm:$0xff]
    %v82 = vld [vmem:[%s0 + $0x28] sm:$0xff]
    %v83 = vld [vmem:[%s0 + $0x30] sm:$0xff]
    %v84 = vld [vmem:[%s0 + $0x38] sm:$0xff]
    %v85 = vld [vmem:[#allocation5] sm:$0xff]
    %v86 = vld [vmem:[#allocation5 + $0x8] sm:$0xff]
    %v87 = vld [vmem:[#allocation5 + $0x10] sm:$0xff]
    %v88 = vld [vmem:[#allocation5 + $0x18] sm:$0xff]
    %v89 = vld [vmem:[#allocation5 + $0x20] sm:$0xff]
    %v90 = vld [vmem:[#allocation5 + $0x28] sm:$0xff]
    %v91 = vld [vmem:[#allocation5 + $0x30] sm:$0xff]
    %v92 = vld [vmem:[#allocation5 + $0x38] sm:$0xff]
    %v93 = vld [vmem:[#allocation5 + $0x40] sm:$0xff]
    %v94 = vld [vmem:[#allocation5 + $0x48] sm:$0xff]
    %v95 = vld [vmem:[#allocation5 + $0x50] sm:$0xff]
    %v96 = vld [vmem:[#allocation5 + $0x58] sm:$0xff]
    %v97 = vld [vmem:[#allocation5 + $0x60] sm:$0xff]
    %v98 = vld [vmem:[#allocation5 + $0x68] sm:$0xff]
    %v99 = vld [vmem:[#allocation5 + $0x70] sm:$0xff]
    %v100 = vld [vmem:[#allocation5 + $0x78] sm:$0xff]
    %v101 = vld [vmem:[%s3] sm:$0xf]
    %v103 = vperm.slane %v101, 0
    %v104 = vperm.slane %v101, 1
    %v105 = vperm.slane %v101, 2
    %v106 = vperm.slane %v101, 3
    %vm111 = vcmask 261120
    %v113 = vsel %vm111, %v77, 0
    %v116 = vsel %vm111, %v78, 0
    %v119 = vsel %vm111, %v79, 0
    %v122 = vsel %vm111, %v80, 0
    %v125 = vsel %vm111, %v81, 0
    %v128 = vsel %vm111, %v82, 0
    %v131 = vsel %vm111, %v83, 0
    %v134 = vsel %vm111, %v84, 0
    %136 = vmatpush.msra.mxu0 0.0
    %137 = vmatpush.msra.mxu0 0.0
    %138 = vmatpush.msra.mxu0 0.0
    %139 = vmatpush.msra.mxu0 0.0
    %140 = vmatpush.msra.mxu0 0.0
    %141 = vmatpush.msra.mxu0 0.0
    %142 = vmatpush.msra.mxu0 0.0
    %143 = vmatpush.msra.mxu0 0.0
    %144 = vmatpush.msra.mxu0 0.0
    %145 = vmatpush.msra.mxu0 0.0
    %146 = vmatpush.msra.mxu0 0.0
    %147 = vmatpush.msra.mxu0 0.0
    %148 = vmatpush.msra.mxu0 %v97
    %149 = vmatpush.msra.mxu0 %v93
    %150 = vmatpush.msra.mxu0 %v89
    %151 = vmatpush.msra.mxu0 %v85
    %152 = vmatmul.f32.gmra.mxu0 %v113
    %v153 = vpop.f32.mrf.mxu0
    %v154 = vadd.f32 %v103, %v153
    %155 = vmatmul.f32.gmra.mxu0 %v116
    %v156 = vpop.f32.mrf.mxu0
    %v157 = vadd.f32 %v103, %v156
    %158 = vmatmul.f32.gmra.mxu0 %v119
    %v159 = vpop.f32.mrf.mxu0
    %v160 = vadd.f32 %v103, %v159
    %161 = vmatmul.f32.gmra.mxu0 %v122
    %v162 = vpop.f32.mrf.mxu0
    %v163 = vadd.f32 %v103, %v162
    %164 = vmatmul.f32.gmra.mxu0 %v125
    %v165 = vpop.f32.mrf.mxu0
    %v166 = vadd.f32 %v103, %v165
    %167 = vmatmul.f32.gmra.mxu0 %v128
    %v168 = vpop.f32.mrf.mxu0
    %v169 = vadd.f32 %v103, %v168
    %170 = vmatmul.f32.gmra.mxu0 %v131
    %v171 = vpop.f32.mrf.mxu0
    %v172 = vadd.f32 %v103, %v171
    %173 = vmatmul.f32.gmra.mxu0 %v134
    %v174 = vpop.f32.mrf.mxu0
    %v175 = vadd.f32 %v103, %v174
    %176 = vdwg.mxu0
    %177 = vmatpush.msra.mxu0 0.0
    %178 = vmatpush.msra.mxu0 0.0
    %179 = vmatpush.msra.mxu0 0.0
    %180 = vmatpush.msra.mxu0 0.0
    %181 = vmatpush.msra.mxu0 0.0
    %182 = vmatpush.msra.mxu0 0.0
    %183 = vmatpush.msra.mxu0 0.0
    %184 = vmatpush.msra.mxu0 0.0
    %185 = vmatpush.msra.mxu0 0.0
    %186 = vmatpush.msra.mxu0 0.0
    %187 = vmatpush.msra.mxu0 0.0
    %188 = vmatpush.msra.mxu0 0.0
    %189 = vmatpush.msra.mxu0 %v98
    %190 = vmatpush.msra.mxu0 %v94
    %191 = vmatpush.msra.mxu0 %v90
    %192 = vmatpush.msra.mxu0 %v86
    %193 = vmatmul.f32.gmra.mxu0 %v113
    %v194 = vpop.f32.mrf.mxu0
    %v195 = vadd.f32 %v104, %v194
    %196 = vmatmul.f32.gmra.mxu0 %v116
    %v197 = vpop.f32.mrf.mxu0
    %v198 = vadd.f32 %v104, %v197
    %199 = vmatmul.f32.gmra.mxu0 %v119
    %v200 = vpop.f32.mrf.mxu0
    %v201 = vadd.f32 %v104, %v200
    %202 = vmatmul.f32.gmra.mxu0 %v122
    %v203 = vpop.f32.mrf.mxu0
    %v204 = vadd.f32 %v104, %v203
    %205 = vmatmul.f32.gmra.mxu0 %v125
    %v206 = vpop.f32.mrf.mxu0
    %v207 = vadd.f32 %v104, %v206
    %208 = vmatmul.f32.gmra.mxu0 %v128
    %v209 = vpop.f32.mrf.mxu0
    %v210 = vadd.f32 %v104, %v209
    %211 = vmatmul.f32.gmra.mxu0 %v131
    %v212 = vpop.f32.mrf.mxu0
    %v213 = vadd.f32 %v104, %v212
    %214 = vmatmul.f32.gmra.mxu0 %v134
    %v215 = vpop.f32.mrf.mxu0
    %v216 = vadd.f32 %v104, %v215
    %217 = vdwg.mxu0
    %218 = vmatpush.msra.mxu0 0.0
    %219 = vmatpush.msra.mxu0 0.0
    %220 = vmatpush.msra.mxu0 0.0
    %221 = vmatpush.msra.mxu0 0.0
    %222 = vmatpush.msra.mxu0 0.0
    %223 = vmatpush.msra.mxu0 0.0
    %224 = vmatpush.msra.mxu0 0.0
    %225 = vmatpush.msra.mxu0 0.0
    %226 = vmatpush.msra.mxu0 0.0
    %227 = vmatpush.msra.mxu0 0.0
    %228 = vmatpush.msra.mxu0 0.0
    %229 = vmatpush.msra.mxu0 0.0
    %230 = vmatpush.msra.mxu0 %v99
    %231 = vmatpush.msra.mxu0 %v95
    %232 = vmatpush.msra.mxu0 %v91
    %233 = vmatpush.msra.mxu0 %v87
    %234 = vmatmul.f32.gmra.mxu0 %v113
    %v235 = vpop.f32.mrf.mxu0
    %v236 = vadd.f32 %v105, %v235
    %237 = vmatmul.f32.gmra.mxu0 %v116
    %v238 = vpop.f32.mrf.mxu0
    %v239 = vadd.f32 %v105, %v238
    %240 = vmatmul.f32.gmra.mxu0 %v119
    %v241 = vpop.f32.mrf.mxu0
    %v242 = vadd.f32 %v105, %v241
    %243 = vmatmul.f32.gmra.mxu0 %v122
    %v244 = vpop.f32.mrf.mxu0
    %v245 = vadd.f32 %v105, %v244
    %246 = vmatmul.f32.gmra.mxu0 %v125
    %v247 = vpop.f32.mrf.mxu0
    %v248 = vadd.f32 %v105, %v247
    %249 = vmatmul.f32.gmra.mxu0 %v128
    %v250 = vpop.f32.mrf.mxu0
    %v251 = vadd.f32 %v105, %v250
    %252 = vmatmul.f32.gmra.mxu0 %v131
    %v253 = vpop.f32.mrf.mxu0
    %v254 = vadd.f32 %v105, %v253
    %255 = vmatmul.f32.gmra.mxu0 %v134
    %v256 = vpop.f32.mrf.mxu0
    %v257 = vadd.f32 %v105, %v256
    %258 = vdwg.mxu0
    %259 = vmatpush.msra.mxu0 0.0
    %260 = vmatpush.msra.mxu0 0.0
    %261 = vmatpush.msra.mxu0 0.0
    %262 = vmatpush.msra.mxu0 0.0
    %263 = vmatpush.msra.mxu0 0.0
    %264 = vmatpush.msra.mxu0 0.0
    %265 = vmatpush.msra.mxu0 0.0
    %266 = vmatpush.msra.mxu0 0.0
    %267 = vmatpush.msra.mxu0 0.0
    %268 = vmatpush.msra.mxu0 0.0
    %269 = vmatpush.msra.mxu0 0.0
    %270 = vmatpush.msra.mxu0 0.0
    %271 = vmatpush.msra.mxu0 %v100
    %272 = vmatpush.msra.mxu0 %v96
    %273 = vmatpush.msra.mxu0 %v92
    %274 = vmatpush.msra.mxu0 %v88
    %275 = vmatmul.f32.gmra.mxu0 %v113
    %v276 = vpop.f32.mrf.mxu0
    %v277 = vadd.f32 %v106, %v276
    %278 = vmatmul.f32.gmra.mxu0 %v116
    %v279 = vpop.f32.mrf.mxu0
    %v280 = vadd.f32 %v106, %v279
    %281 = vmatmul.f32.gmra.mxu0 %v119
    %v282 = vpop.f32.mrf.mxu0
    %v283 = vadd.f32 %v106, %v282
    %284 = vmatmul.f32.gmra.mxu0 %v122
    %v285 = vpop.f32.mrf.mxu0
    %v286 = vadd.f32 %v106, %v285
    %287 = vmatmul.f32.gmra.mxu0 %v125
    %v288 = vpop.f32.mrf.mxu0
    %v289 = vadd.f32 %v106, %v288
    %290 = vmatmul.f32.gmra.mxu0 %v128
    %v291 = vpop.f32.mrf.mxu0
    %v292 = vadd.f32 %v106, %v291
    %293 = vmatmul.f32.gmra.mxu0 %v131
    %v294 = vpop.f32.mrf.mxu0
    %v295 = vadd.f32 %v106, %v294
    %296 = vmatmul.f32.gmra.mxu0 %v134
    %v297 = vpop.f32.mrf.mxu0
    %v298 = vadd.f32 %v106, %v297
    %299 = vdwg.mxu0
    %300 = vst [vmem:[#allocation2] sm:$0xff] %v154
    %301 = vst [vmem:[#allocation2 + $0x8] sm:$0xff] %v195
    %302 = vst [vmem:[#allocation2 + $0x10] sm:$0xff] %v236
    %303 = vst [vmem:[#allocation2 + $0x18] sm:$0xff] %v277
    %304 = vst [vmem:[#allocation2 + $0x20] sm:$0xff] %v157
    %305 = vst [vmem:[#allocation2 + $0x28] sm:$0xff] %v198
    %306 = vst [vmem:[#allocation2 + $0x30] sm:$0xff] %v239
    %307 = vst [vmem:[#allocation2 + $0x38] sm:$0xff] %v280
    %308 = vst [vmem:[#allocation2 + $0x40] sm:$0xff] %v160
    %309 = vst [vmem:[#allocation2 + $0x48] sm:$0xff] %v201
    %310 = vst [vmem:[#allocation2 + $0x50] sm:$0xff] %v242
    %311 = vst [vmem:[#allocation2 + $0x58] sm:$0xff] %v283
    %312 = vst [vmem:[#allocation2 + $0x60] sm:$0xff] %v163
    %313 = vst [vmem:[#allocation2 + $0x68] sm:$0xff] %v204
    %314 = vst [vmem:[#allocation2 + $0x70] sm:$0xff] %v245
    %315 = vst [vmem:[#allocation2 + $0x78] sm:$0xff] %v286
    %316 = vst [vmem:[#allocation2 + $0x80] sm:$0xff] %v166
    %317 = vst [vmem:[#allocation2 + $0x88] sm:$0xff] %v207
    %318 = vst [vmem:[#allocation2 + $0x90] sm:$0xff] %v248
    %319 = vst [vmem:[#allocation2 + $0x98] sm:$0xff] %v289
    %320 = vst [vmem:[#allocation2 + $0xa0] sm:$0xff] %v169
    %321 = vst [vmem:[#allocation2 + $0xa8] sm:$0xff] %v210
    %322 = vst [vmem:[#allocation2 + $0xb0] sm:$0xff] %v251
    %323 = vst [vmem:[#allocation2 + $0xb8] sm:$0xff] %v292
    %324 = vst [vmem:[#allocation2 + $0xc0] sm:$0xff] %v172
    %325 = vst [vmem:[#allocation2 + $0xc8] sm:$0xff] %v213
    %326 = vst [vmem:[#allocation2 + $0xd0] sm:$0xff] %v254
    %327 = vst [vmem:[#allocation2 + $0xd8] sm:$0xff] %v295
    %328 = vst [vmem:[#allocation2 + $0xe0] sm:$0xff] %v175
    %329 = vst [vmem:[#allocation2 + $0xe8] sm:$0xff] %v216
    %330 = vst [vmem:[#allocation2 + $0xf0] sm:$0xff] %v257
    %331 = vst [vmem:[#allocation2 + $0xf8] sm:$0xff] %v298
    %v332 = vld [vmem:[#allocation3] sm:$0xff]
    %v333 = vld [vmem:[#allocation4] sm:$0xff]
    %s334 = smul.u32 0, 4
    %s335 = smul.addr %s334, 8
    %s336 = scalar_lea.vmem [#allocation2], %s335
    %v337 = vld [vmem:[%s336] sm:$0xff]
    %v338 = vld [vmem:[%s336 + $0x8] sm:$0xff]
    %v339 = vld [vmem:[%s336 + $0x10] sm:$0xff]
    %v340 = vld [vmem:[%s336 + $0x18] sm:$0xff]
    %v341 = vld [vmem:[#allocation8] sm:$0xff]
    %v342 = vld [vmem:[#allocation8 + $0x8] sm:$0xff]
    %v343 = vld [vmem:[#allocation8 + $0x10] sm:$0xff]
    %v344 = vld [vmem:[#allocation8 + $0x18] sm:$0xff]
    %v345 = vld [vmem:[#allocation8 + $0x20] sm:$0xff]
    %v346 = vld [vmem:[#allocation8 + $0x28] sm:$0xff]
    %v347 = vld [vmem:[#allocation8 + $0x30] sm:$0xff]
    %v348 = vld [vmem:[#allocation8 + $0x38] sm:$0xff]
    %v349 = vld [vmem:[#allocation8 + $0x40] sm:$0xff]
    %v350 = vld [vmem:[#allocation8 + $0x48] sm:$0xff]
    %v351 = vld [vmem:[#allocation8 + $0x50] sm:$0xff]
    %v352 = vld [vmem:[#allocation8 + $0x58] sm:$0xff]
    %v353 = vld [vmem:[#allocation8 + $0x60] sm:$0xff]
    %v354 = vld [vmem:[#allocation8 + $0x68] sm:$0xff]
    %v355 = vld [vmem:[#allocation8 + $0x70] sm:$0xff]
    %v356 = vld [vmem:[#allocation8 + $0x78] sm:$0xff]
    %v357 = vld [vmem:[#allocation8 + $0x80] sm:$0xff]
    %v358 = vld [vmem:[#allocation8 + $0x88] sm:$0xff]
    %v359 = vld [vmem:[#allocation8 + $0x90] sm:$0xff]
    %v360 = vld [vmem:[#allocation8 + $0x98] sm:$0xff]
    %v361 = vld [vmem:[#allocation8 + $0xa0] sm:$0xff]
    %v362 = vld [vmem:[#allocation8 + $0xa8] sm:$0xff]
    %v363 = vld [vmem:[#allocation8 + $0xb0] sm:$0xff]
    %v364 = vld [vmem:[#allocation8 + $0xb8] sm:$0xff]
    %v365 = vld [vmem:[#allocation8 + $0xc0] sm:$0xff]
    %v366 = vld [vmem:[#allocation8 + $0xc8] sm:$0xff]
    %v367 = vld [vmem:[#allocation8 + $0xd0] sm:$0xff]
    %v368 = vld [vmem:[#allocation8 + $0xd8] sm:$0xff]
    %v369 = vld [vmem:[#allocation8 + $0xe0] sm:$0xff]
    %v370 = vld [vmem:[#allocation8 + $0xe8] sm:$0xff]
    %v371 = vld [vmem:[#allocation8 + $0xf0] sm:$0xff]
    %v372 = vld [vmem:[#allocation8 + $0xf8] sm:$0xff]
    %v373 = vld [vmem:[#allocation8 + $0x100] sm:$0xff]
    %v374 = vld [vmem:[#allocation8 + $0x108] sm:$0xff]
    %v375 = vld [vmem:[#allocation8 + $0x110] sm:$0xff]
    %v376 = vld [vmem:[#allocation8 + $0x118] sm:$0xff]
    %v377 = vld [vmem:[#allocation8 + $0x120] sm:$0xff]
    %v378 = vld [vmem:[#allocation8 + $0x128] sm:$0xff]
    %v379 = vld [vmem:[#allocation8 + $0x130] sm:$0xff]
    %v380 = vld [vmem:[#allocation8 + $0x138] sm:$0xff]
    %v381 = vld [vmem:[#allocation8 + $0x140] sm:$0xff]
    %v382 = vld [vmem:[#allocation8 + $0x148] sm:$0xff]
    %v383 = vld [vmem:[#allocation8 + $0x150] sm:$0xff]
    %v384 = vld [vmem:[#allocation8 + $0x158] sm:$0xff]
    %v385 = vld [vmem:[#allocation8 + $0x160] sm:$0xff]
    %v386 = vld [vmem:[#allocation8 + $0x168] sm:$0xff]
    %v387 = vld [vmem:[#allocation8 + $0x170] sm:$0xff]
    %v388 = vld [vmem:[#allocation8 + $0x178] sm:$0xff]
    %v389 = vld [vmem:[#allocation8 + $0x180] sm:$0xff]
    %v390 = vld [vmem:[#allocation8 + $0x188] sm:$0xff]
    %v391 = vld [vmem:[#allocation8 + $0x190] sm:$0xff]
    %v392 = vld [vmem:[#allocation8 + $0x198] sm:$0xff]
    %v393 = vld [vmem:[#allocation8 + $0x1a0] sm:$0xff]
    %v394 = vld [vmem:[#allocation8 + $0x1a8] sm:$0xff]
    %v395 = vld [vmem:[#allocation8 + $0x1b0] sm:$0xff]
    %v396 = vld [vmem:[#allocation8 + $0x1b8] sm:$0xff]
    %v397 = vld [vmem:[#allocation8 + $0x1c0] sm:$0xff]
    %v398 = vld [vmem:[#allocation8 + $0x1c8] sm:$0xff]
    %v399 = vld [vmem:[#allocation8 + $0x1d0] sm:$0xff]
    %v400 = vld [vmem:[#allocation8 + $0x1d8] sm:$0xff]
    %v401 = vld [vmem:[#allocation8 + $0x1e0] sm:$0xff]
    %v402 = vld [vmem:[#allocation8 + $0x1e8] sm:$0xff]
    %v403 = vld [vmem:[#allocation8 + $0x1f0] sm:$0xff]
    %v404 = vld [vmem:[#allocation8 + $0x1f8] sm:$0xff]
    %405 = vmatpush.msra.mxu0 %v401
    %406 = vmatpush.msra.mxu0 %v397
    %407 = vmatpush.msra.mxu0 %v393
    %408 = vmatpush.msra.mxu0 %v389
    %409 = vmatpush.msra.mxu0 %v385
    %410 = vmatpush.msra.mxu0 %v381
    %411 = vmatpush.msra.mxu0 %v377
    %412 = vmatpush.msra.mxu0 %v373
    %413 = vmatpush.msra.mxu0 %v369
    %414 = vmatpush.msra.mxu0 %v365
    %415 = vmatpush.msra.mxu0 %v361
    %416 = vmatpush.msra.mxu0 %v357
    %417 = vmatpush.msra.mxu0 %v353
    %418 = vmatpush.msra.mxu0 %v349
    %419 = vmatpush.msra.mxu0 %v345
    %420 = vmatpush.msra.mxu0 %v341
    %421 = vmatmul.f32.gmra.mxu0 %v332
    %v422 = vpop.f32.mrf.mxu0
    %v423 = vadd.f32 0.0, %v422
    %424 = vdwg.mxu0
    %425 = vmatpush.msra.mxu0 %v402
    %426 = vmatpush.msra.mxu0 %v398
    %427 = vmatpush.msra.mxu0 %v394
    %428 = vmatpush.msra.mxu0 %v390
    %429 = vmatpush.msra.mxu0 %v386
    %430 = vmatpush.msra.mxu0 %v382
    %431 = vmatpush.msra.mxu0 %v378
    %432 = vmatpush.msra.mxu0 %v374
    %433 = vmatpush.msra.mxu0 %v370
    %434 = vmatpush.msra.mxu0 %v366
    %435 = vmatpush.msra.mxu0 %v362
    %436 = vmatpush.msra.mxu0 %v358
    %437 = vmatpush.msra.mxu0 %v354
    %438 = vmatpush.msra.mxu0 %v350
    %439 = vmatpush.msra.mxu0 %v346
    %440 = vmatpush.msra.mxu0 %v342
    %441 = vmatmul.f32.gmra.mxu0 %v332
    %v442 = vpop.f32.mrf.mxu0
    %v443 = vadd.f32 0.0, %v442
    %444 = vdwg.mxu0
    %445 = vmatpush.msra.mxu0 %v403
    %446 = vmatpush.msra.mxu0 %v399
    %447 = vmatpush.msra.mxu0 %v395
    %448 = vmatpush.msra.mxu0 %v391
    %449 = vmatpush.msra.mxu0 %v387
    %450 = vmatpush.msra.mxu0 %v383
    %451 = vmatpush.msra.mxu0 %v379
    %452 = vmatpush.msra.mxu0 %v375
    %453 = vmatpush.msra.mxu0 %v371
    %454 = vmatpush.msra.mxu0 %v367
    %455 = vmatpush.msra.mxu0 %v363
    %456 = vmatpush.msra.mxu0 %v359
    %457 = vmatpush.msra.mxu0 %v355
    %458 = vmatpush.msra.mxu0 %v351
    %459 = vmatpush.msra.mxu0 %v347
    %460 = vmatpush.msra.mxu0 %v343
    %461 = vmatmul.f32.gmra.mxu0 %v332
    %v462 = vpop.f32.mrf.mxu0
    %v463 = vadd.f32 0.0, %v462
    %464 = vdwg.mxu0
    %465 = vmatpush.msra.mxu0 %v404
    %466 = vmatpush.msra.mxu0 %v400
    %467 = vmatpush.msra.mxu0 %v396
    %468 = vmatpush.msra.mxu0 %v392
    %469 = vmatpush.msra.mxu0 %v388
    %470 = vmatpush.msra.mxu0 %v384
    %471 = vmatpush.msra.mxu0 %v380
    %472 = vmatpush.msra.mxu0 %v376
    %473 = vmatpush.msra.mxu0 %v372
    %474 = vmatpush.msra.mxu0 %v368
    %475 = vmatpush.msra.mxu0 %v364
    %476 = vmatpush.msra.mxu0 %v360
    %477 = vmatpush.msra.mxu0 %v356
    %478 = vmatpush.msra.mxu0 %v352
    %479 = vmatpush.msra.mxu0 %v348
    %480 = vmatpush.msra.mxu0 %v344
    %481 = vmatmul.f32.gmra.mxu0 %v332
    %v482 = vpop.f32.mrf.mxu0
    %v483 = vadd.f32 0.0, %v482
    %484 = vdwg.mxu0
    %v485 = vadd.f32 %v337, %v423
    %v486 = vadd.f32 %v338, %v443
    %v487 = vadd.f32 %v339, %v463
    %v488 = vadd.f32 %v340, %v483
    %v489 = vxor.u32 %v485, 2147483648
    %v490 = vmul.f32 %v489, 1.442695
    %v491 = vpow.pop %v490
    %v492 = vadd.f32 %v491, 1.0
    %v493 = vrcp.pop %v492
    %v494 = vmul.f32 %v492, %v493
    %v495 = vsub.f32 1.0, %v494
    %v496 = vmul.f32 %v493, %v495
    %v497 = vadd.f32 %v493, %v496
    %vm498 = vweird.f32 %v492
    %vm499 = vweird.f32 %v493
    %vm500 = vmor %vm498, %vm499
    %v501 = vsel %vm500, %v493, %v497
    %v502 = vand.u32 2147483647, %v492
    %vm503 = vcmp.eq.f32.partialorder %v502, 8.507059e+37
    %v504 = vand.u32 %v492, 2147483648
    %v505 = vor.u32 1.1754944e-38, %v504
    %v506 = vsel %vm503, %v505, %v501
    %v507 = vmul.f32 1.0, %v506
    %v508 = vxor.u32 %v486, 2147483648
    %v509 = vmul.f32 %v508, 1.442695
    %v510 = vpow.pop %v509
    %v511 = vadd.f32 %v510, 1.0
    %v512 = vrcp.pop %v511
    %v513 = vmul.f32 %v511, %v512
    %v514 = vsub.f32 1.0, %v513
    %v515 = vmul.f32 %v512, %v514
    %v516 = vadd.f32 %v512, %v515
    %vm517 = vweird.f32 %v511
    %vm518 = vweird.f32 %v512
    %vm519 = vmor %vm517, %vm518
    %v520 = vsel %vm519, %v512, %v516
    %v521 = vand.u32 2147483647, %v511
    %vm522 = vcmp.eq.f32.partialorder %v521, 8.507059e+37
    %v523 = vand.u32 %v511, 2147483648
    %v524 = vor.u32 1.1754944e-38, %v523
    %v525 = vsel %vm522, %v524, %v520
    %v526 = vmul.f32 1.0, %v525
    %v527 = vtanh.pop %v487
    %v528 = vxor.u32 %v488, 2147483648
    %v529 = vmul.f32 %v528, 1.442695
    %v530 = vpow.pop %v529
    %v531 = vadd.f32 %v530, 1.0
    %v532 = vrcp.pop %v531
    %v533 = vmul.f32 %v531, %v532
    %v534 = vsub.f32 1.0, %v533
    %v535 = vmul.f32 %v532, %v534
    %v536 = vadd.f32 %v532, %v535
    %vm537 = vweird.f32 %v531
    %vm538 = vweird.f32 %v532
    %vm539 = vmor %vm537, %vm538
    %v540 = vsel %vm539, %v532, %v536
    %v541 = vand.u32 2147483647, %v531
    %vm542 = vcmp.eq.f32.partialorder %v541, 8.507059e+37
    %v543 = vand.u32 %v531, 2147483648
    %v544 = vor.u32 1.1754944e-38, %v543
    %v545 = vsel %vm542, %v544, %v540
    %v546 = vmul.f32 1.0, %v545
    %v547 = vmul.f32 %v526, %v333
    %v548 = vmul.f32 %v507, %v527
    %v549 = vadd.f32 %v547, %v548
    %v550 = vtanh.pop %v549
    %v551 = vmul.f32 %v546, %v550
    %s552 = smul.u32 1, 4
    %s553 = smul.addr %s552, 8
    %s554 = scalar_lea.vmem [#allocation2], %s553
    %v555 = vld [vmem:[%s554] sm:$0xff]
    %v556 = vld [vmem:[%s554 + $0x8] sm:$0xff]
    %v557 = vld [vmem:[%s554 + $0x10] sm:$0xff]
    %v558 = vld [vmem:[%s554 + $0x18] sm:$0xff]
    %559 = vmatpush.msra.mxu0 %v401
    %560 = vmatpush.msra.mxu0 %v397
    %561 = vmatpush.msra.mxu0 %v393
    %562 = vmatpush.msra.mxu0 %v389
    %563 = vmatpush.msra.mxu0 %v385
    %564 = vmatpush.msra.mxu0 %v381
    %565 = vmatpush.msra.mxu0 %v377
    %566 = vmatpush.msra.mxu0 %v373
    %567 = vmatpush.msra.mxu0 %v369
    %568 = vmatpush.msra.mxu0 %v365
    %569 = vmatpush.msra.mxu0 %v361
    %570 = vmatpush.msra.mxu0 %v357
    %571 = vmatpush.msra.mxu0 %v353
    %572 = vmatpush.msra.mxu0 %v349
    %573 = vmatpush.msra.mxu0 %v345
    %574 = vmatpush.msra.mxu0 %v341
    %575 = vmatmul.f32.gmra.mxu0 %v551
    %v576 = vpop.f32.mrf.mxu0
    %v577 = vadd.f32 0.0, %v576
    %578 = vdwg.mxu0
    %579 = vmatpush.msra.mxu0 %v402
    %580 = vmatpush.msra.mxu0 %v398
    %581 = vmatpush.msra.mxu0 %v394
    %582 = vmatpush.msra.mxu0 %v390
    %583 = vmatpush.msra.mxu0 %v386
    %584 = vmatpush.msra.mxu0 %v382
    %585 = vmatpush.msra.mxu0 %v378
    %586 = vmatpush.msra.mxu0 %v374
    %587 = vmatpush.msra.mxu0 %v370
    %588 = vmatpush.msra.mxu0 %v366
    %589 = vmatpush.msra.mxu0 %v362
    %590 = vmatpush.msra.mxu0 %v358
    %591 = vmatpush.msra.mxu0 %v354
    %592 = vmatpush.msra.mxu0 %v350
    %593 = vmatpush.msra.mxu0 %v346
    %594 = vmatpush.msra.mxu0 %v342
    %595 = vmatmul.f32.gmra.mxu0 %v551
    %v596 = vpop.f32.mrf.mxu0
    %v597 = vadd.f32 0.0, %v596
    %598 = vdwg.mxu0
    %599 = vmatpush.msra.mxu0 %v403
    %600 = vmatpush.msra.mxu0 %v399
    %601 = vmatpush.msra.mxu0 %v395
    %602 = vmatpush.msra.mxu0 %v391
    %603 = vmatpush.msra.mxu0 %v387
    %604 = vmatpush.msra.mxu0 %v383
    %605 = vmatpush.msra.mxu0 %v379
    %606 = vmatpush.msra.mxu0 %v375
    %607 = vmatpush.msra.mxu0 %v371
    %608 = vmatpush.msra.mxu0 %v367
    %609 = vmatpush.msra.mxu0 %v363
    %610 = vmatpush.msra.mxu0 %v359
    %611 = vmatpush.msra.mxu0 %v355
    %612 = vmatpush.msra.mxu0 %v351
    %613 = vmatpush.msra.mxu0 %v347
    %614 = vmatpush.msra.mxu0 %v343
    %615 = vmatmul.f32.gmra.mxu0 %v551
    %v616 = vpop.f32.mrf.mxu0
    %v617 = vadd.f32 0.0, %v616
    %618 = vdwg.mxu0
    %619 = vmatpush.msra.mxu0 %v404
    %620 = vmatpush.msra.mxu0 %v400
    %621 = vmatpush.msra.mxu0 %v396
    %622 = vmatpush.msra.mxu0 %v392
    %623 = vmatpush.msra.mxu0 %v388
    %624 = vmatpush.msra.mxu0 %v384
    %625 = vmatpush.msra.mxu0 %v380
    %626 = vmatpush.msra.mxu0 %v376
    %627 = vmatpush.msra.mxu0 %v372
    %628 = vmatpush.msra.mxu0 %v368
    %629 = vmatpush.msra.mxu0 %v364
    %630 = vmatpush.msra.mxu0 %v360
    %631 = vmatpush.msra.mxu0 %v356
    %632 = vmatpush.msra.mxu0 %v352
    %633 = vmatpush.msra.mxu0 %v348
    %634 = vmatpush.msra.mxu0 %v344
    %635 = vmatmul.f32.gmra.mxu0 %v551
    %v636 = vpop.f32.mrf.mxu0
    %v637 = vadd.f32 0.0, %v636
    %638 = vdwg.mxu0
    %v639 = vadd.f32 %v555, %v577
    %v640 = vadd.f32 %v556, %v597
    %v641 = vadd.f32 %v557, %v617
    %v642 = vadd.f32 %v558, %v637
    %v643 = vxor.u32 %v639, 2147483648
    %v644 = vmul.f32 %v643, 1.442695
    %v645 = vpow.pop %v644
    %v646 = vadd.f32 %v645, 1.0
    %v647 = vrcp.pop %v646
    %v648 = vmul.f32 %v646, %v647
    %v649 = vsub.f32 1.0, %v648
    %v650 = vmul.f32 %v647, %v649
    %v651 = vadd.f32 %v647, %v650
    %vm652 = vweird.f32 %v646
    %vm653 = vweird.f32 %v647
    %vm654 = vmor %vm652, %vm653
    %v655 = vsel %vm654, %v647, %v651
    %v656 = vand.u32 2147483647, %v646
    %vm657 = vcmp.eq.f32.partialorder %v656, 8.507059e+37
    %v658 = vand.u32 %v646, 2147483648
    %v659 = vor.u32 1.1754944e-38, %v658
    %v660 = vsel %vm657, %v659, %v655
    %v661 = vmul.f32 1.0, %v660
    %v662 = vxor.u32 %v640, 2147483648
    %v663 = vmul.f32 %v662, 1.442695
    %v664 = vpow.pop %v663
    %v665 = vadd.f32 %v664, 1.0
    %v666 = vrcp.pop %v665
    %v667 = vmul.f32 %v665, %v666
    %v668 = vsub.f32 1.0, %v667
    %v669 = vmul.f32 %v666, %v668
    %v670 = vadd.f32 %v666, %v669
    %vm671 = vweird.f32 %v665
    %vm672 = vweird.f32 %v666
    %vm673 = vmor %vm671, %vm672
    %v674 = vsel %vm673, %v666, %v670
    %v675 = vand.u32 2147483647, %v665
    %vm676 = vcmp.eq.f32.partialorder %v675, 8.507059e+37
    %v677 = vand.u32 %v665, 2147483648
    %v678 = vor.u32 1.1754944e-38, %v677
    %v679 = vsel %vm676, %v678, %v674
    %v680 = vmul.f32 1.0, %v679
    %v681 = vtanh.pop %v641
    %v682 = vxor.u32 %v642, 2147483648
    %v683 = vmul.f32 %v682, 1.442695
    %v684 = vpow.pop %v683
    %v685 = vadd.f32 %v684, 1.0
    %v686 = vrcp.pop %v685
    %v687 = vmul.f32 %v685, %v686
    %v688 = vsub.f32 1.0, %v687
    %v689 = vmul.f32 %v686, %v688
    %v690 = vadd.f32 %v686, %v689
    %vm691 = vweird.f32 %v685
    %vm692 = vweird.f32 %v686
    %vm693 = vmor %vm691, %vm692
    %v694 = vsel %vm693, %v686, %v690
    %v695 = vand.u32 2147483647, %v685
    %vm696 = vcmp.eq.f32.partialorder %v695, 8.507059e+37
    %v697 = vand.u32 %v685, 2147483648
    %v698 = vor.u32 1.1754944e-38, %v697
    %v699 = vsel %vm696, %v698, %v694
    %v700 = vmul.f32 1.0, %v699
    %v701 = vmul.f32 %v680, %v549
    %v702 = vmul.f32 %v661, %v681
    %v703 = vadd.f32 %v701, %v702
    %v704 = vtanh.pop %v703
    %v705 = vmul.f32 %v700, %v704
    %s706 = smul.u32 2, 4
    %s707 = smul.addr %s706, 8
    %s708 = scalar_lea.vmem [#allocation2], %s707
    %v709 = vld [vmem:[%s708] sm:$0xff]
    %v710 = vld [vmem:[%s708 + $0x8] sm:$0xff]
    %v711 = vld [vmem:[%s708 + $0x10] sm:$0xff]
    %v712 = vld [vmem:[%s708 + $0x18] sm:$0xff]
    %713 = vmatpush.msra.mxu0 %v401
    %714 = vmatpush.msra.mxu0 %v397
    %715 = vmatpush.msra.mxu0 %v393
    %716 = vmatpush.msra.mxu0 %v389
    %717 = vmatpush.msra.mxu0 %v385
    %718 = vmatpush.msra.mxu0 %v381
    %719 = vmatpush.msra.mxu0 %v377
    %720 = vmatpush.msra.mxu0 %v373
    %721 = vmatpush.msra.mxu0 %v369
    %722 = vmatpush.msra.mxu0 %v365
    %723 = vmatpush.msra.mxu0 %v361
    %724 = vmatpush.msra.mxu0 %v357
    %725 = vmatpush.msra.mxu0 %v353
    %726 = vmatpush.msra.mxu0 %v349
    %727 = vmatpush.msra.mxu0 %v345
    %728 = vmatpush.msra.mxu0 %v341
    %729 = vmatmul.f32.gmra.mxu0 %v705
    %v730 = vpop.f32.mrf.mxu0
    %v731 = vadd.f32 0.0, %v730
    %732 = vdwg.mxu0
    %733 = vmatpush.msra.mxu0 %v402
    %734 = vmatpush.msra.mxu0 %v398
    %735 = vmatpush.msra.mxu0 %v394
    %736 = vmatpush.msra.mxu0 %v390
    %737 = vmatpush.msra.mxu0 %v386
    %738 = vmatpush.msra.mxu0 %v382
    %739 = vmatpush.msra.mxu0 %v378
    %740 = vmatpush.msra.mxu0 %v374
    %741 = vmatpush.msra.mxu0 %v370
    %742 = vmatpush.msra.mxu0 %v366
    %743 = vmatpush.msra.mxu0 %v362
    %744 = vmatpush.msra.mxu0 %v358
    %745 = vmatpush.msra.mxu0 %v354
    %746 = vmatpush.msra.mxu0 %v350
    %747 = vmatpush.msra.mxu0 %v346
    %748 = vmatpush.msra.mxu0 %v342
    %749 = vmatmul.f32.gmra.mxu0 %v705
    %v750 = vpop.f32.mrf.mxu0
    %v751 = vadd.f32 0.0, %v750
    %752 = vdwg.mxu0
    %753 = vmatpush.msra.mxu0 %v403
    %754 = vmatpush.msra.mxu0 %v399
    %755 = vmatpush.msra.mxu0 %v395
    %756 = vmatpush.msra.mxu0 %v391
    %757 = vmatpush.msra.mxu0 %v387
    %758 = vmatpush.msra.mxu0 %v383
    %759 = vmatpush.msra.mxu0 %v379
    %760 = vmatpush.msra.mxu0 %v375
    %761 = vmatpush.msra.mxu0 %v371
    %762 = vmatpush.msra.mxu0 %v367
    %763 = vmatpush.msra.mxu0 %v363
    %764 = vmatpush.msra.mxu0 %v359
    %765 = vmatpush.msra.mxu0 %v355
    %766 = vmatpush.msra.mxu0 %v351
    %767 = vmatpush.msra.mxu0 %v347
    %768 = vmatpush.msra.mxu0 %v343
    %769 = vmatmul.f32.gmra.mxu0 %v705
    %v770 = vpop.f32.mrf.mxu0
    %v771 = vadd.f32 0.0, %v770
    %772 = vdwg.mxu0
    %773 = vmatpush.msra.mxu0 %v404
    %774 = vmatpush.msra.mxu0 %v400
    %775 = vmatpush.msra.mxu0 %v396
    %776 = vmatpush.msra.mxu0 %v392
    %777 = vmatpush.msra.mxu0 %v388
    %778 = vmatpush.msra.mxu0 %v384
    %779 = vmatpush.msra.mxu0 %v380
    %780 = vmatpush.msra.mxu0 %v376
    %781 = vmatpush.msra.mxu0 %v372
    %782 = vmatpush.msra.mxu0 %v368
    %783 = vmatpush.msra.mxu0 %v364
    %784 = vmatpush.msra.mxu0 %v360
    %785 = vmatpush.msra.mxu0 %v356
    %786 = vmatpush.msra.mxu0 %v352
    %787 = vmatpush.msra.mxu0 %v348
    %788 = vmatpush.msra.mxu0 %v344
    %789 = vmatmul.f32.gmra.mxu0 %v705
    %v790 = vpop.f32.mrf.mxu0
    %v791 = vadd.f32 0.0, %v790
    %792 = vdwg.mxu0
    %v793 = vadd.f32 %v709, %v731
    %v794 = vadd.f32 %v710, %v751
    %v795 = vadd.f32 %v711, %v771
    %v796 = vadd.f32 %v712, %v791
    %v797 = vxor.u32 %v793, 2147483648
    %v798 = vmul.f32 %v797, 1.442695
    %v799 = vpow.pop %v798
    %v800 = vadd.f32 %v799, 1.0
    %v801 = vrcp.pop %v800
    %v802 = vmul.f32 %v800, %v801
    %v803 = vsub.f32 1.0, %v802
    %v804 = vmul.f32 %v801, %v803
    %v805 = vadd.f32 %v801, %v804
    %vm806 = vweird.f32 %v800
    %vm807 = vweird.f32 %v801
    %vm808 = vmor %vm806, %vm807
    %v809 = vsel %vm808, %v801, %v805
    %v810 = vand.u32 2147483647, %v800
    %vm811 = vcmp.eq.f32.partialorder %v810, 8.507059e+37
    %v812 = vand.u32 %v800, 2147483648
    %v813 = vor.u32 1.1754944e-38, %v812
    %v814 = vsel %vm811, %v813, %v809
    %v815 = vmul.f32 1.0, %v814
    %v816 = vxor.u32 %v794, 2147483648
    %v817 = vmul.f32 %v816, 1.442695
    %v818 = vpow.pop %v817
    %v819 = vadd.f32 %v818, 1.0
    %v820 = vrcp.pop %v819
    %v821 = vmul.f32 %v819, %v820
    %v822 = vsub.f32 1.0, %v821
    %v823 = vmul.f32 %v820, %v822
    %v824 = vadd.f32 %v820, %v823
    %vm825 = vweird.f32 %v819
    %vm826 = vweird.f32 %v820
    %vm827 = vmor %vm825, %vm826
    %v828 = vsel %vm827, %v820, %v824
    %v829 = vand.u32 2147483647, %v819
    %vm830 = vcmp.eq.f32.partialorder %v829, 8.507059e+37
    %v831 = vand.u32 %v819, 2147483648
    %v832 = vor.u32 1.1754944e-38, %v831
    %v833 = vsel %vm830, %v832, %v828
    %v834 = vmul.f32 1.0, %v833
    %v835 = vtanh.pop %v795
    %v836 = vxor.u32 %v796, 2147483648
    %v837 = vmul.f32 %v836, 1.442695
    %v838 = vpow.pop %v837
    %v839 = vadd.f32 %v838, 1.0
    %v840 = vrcp.pop %v839
    %v841 = vmul.f32 %v839, %v840
    %v842 = vsub.f32 1.0, %v841
    %v843 = vmul.f32 %v840, %v842
    %v844 = vadd.f32 %v840, %v843
    %vm845 = vweird.f32 %v839
    %vm846 = vweird.f32 %v840
    %vm847 = vmor %vm845, %vm846
    %v848 = vsel %vm847, %v840, %v844
    %v849 = vand.u32 2147483647, %v839
    %vm850 = vcmp.eq.f32.partialorder %v849, 8.507059e+37
    %v851 = vand.u32 %v839, 2147483648
    %v852 = vor.u32 1.1754944e-38, %v851
    %v853 = vsel %vm850, %v852, %v848
    %v854 = vmul.f32 1.0, %v853
    %v855 = vmul.f32 %v834, %v703
    %v856 = vmul.f32 %v815, %v835
    %v857 = vadd.f32 %v855, %v856
    %v858 = vtanh.pop %v857
    %v859 = vmul.f32 %v854, %v858
    %s860 = smul.u32 3, 4
    %s861 = smul.addr %s860, 8
    %s862 = scalar_lea.vmem [#allocation2], %s861
    %v863 = vld [vmem:[%s862] sm:$0xff]
    %v864 = vld [vmem:[%s862 + $0x8] sm:$0xff]
    %v865 = vld [vmem:[%s862 + $0x10] sm:$0xff]
    %v866 = vld [vmem:[%s862 + $0x18] sm:$0xff]
    %867 = vmatpush.msra.mxu0 %v401
    %868 = vmatpush.msra.mxu0 %v397
    %869 = vmatpush.msra.mxu0 %v393
    %870 = vmatpush.msra.mxu0 %v389
    %871 = vmatpush.msra.mxu0 %v385
    %872 = vmatpush.msra.mxu0 %v381
    %873 = vmatpush.msra.mxu0 %v377
    %874 = vmatpush.msra.mxu0 %v373
    %875 = vmatpush.msra.mxu0 %v369
    %876 = vmatpush.msra.mxu0 %v365
    %877 = vmatpush.msra.mxu0 %v361
    %878 = vmatpush.msra.mxu0 %v357
    %879 = vmatpush.msra.mxu0 %v353
    %880 = vmatpush.msra.mxu0 %v349
    %881 = vmatpush.msra.mxu0 %v345
    %882 = vmatpush.msra.mxu0 %v341
    %883 = vmatmul.f32.gmra.mxu0 %v859
    %v884 = vpop.f32.mrf.mxu0
    %v885 = vadd.f32 0.0, %v884
    %886 = vdwg.mxu0
    %887 = vmatpush.msra.mxu0 %v402
    %888 = vmatpush.msra.mxu0 %v398
    %889 = vmatpush.msra.mxu0 %v394
    %890 = vmatpush.msra.mxu0 %v390
    %891 = vmatpush.msra.mxu0 %v386
    %892 = vmatpush.msra.mxu0 %v382
    %893 = vmatpush.msra.mxu0 %v378
    %894 = vmatpush.msra.mxu0 %v374
    %895 = vmatpush.msra.mxu0 %v370
    %896 = vmatpush.msra.mxu0 %v366
    %897 = vmatpush.msra.mxu0 %v362
    %898 = vmatpush.msra.mxu0 %v358
    %899 = vmatpush.msra.mxu0 %v354
    %900 = vmatpush.msra.mxu0 %v350
    %901 = vmatpush.msra.mxu0 %v346
    %902 = vmatpush.msra.mxu0 %v342
    %903 = vmatmul.f32.gmra.mxu0 %v859
    %v904 = vpop.f32.mrf.mxu0
    %v905 = vadd.f32 0.0, %v904
    %906 = vdwg.mxu0
    %907 = vmatpush.msra.mxu0 %v403
    %908 = vmatpush.msra.mxu0 %v399
    %909 = vmatpush.msra.mxu0 %v395
    %910 = vmatpush.msra.mxu0 %v391
    %911 = vmatpush.msra.mxu0 %v387
    %912 = vmatpush.msra.mxu0 %v383
    %913 = vmatpush.msra.mxu0 %v379
    %914 = vmatpush.msra.mxu0 %v375
    %915 = vmatpush.msra.mxu0 %v371
    %916 = vmatpush.msra.mxu0 %v367
    %917 = vmatpush.msra.mxu0 %v363
    %918 = vmatpush.msra.mxu0 %v359
    %919 = vmatpush.msra.mxu0 %v355
    %920 = vmatpush.msra.mxu0 %v351
    %921 = vmatpush.msra.mxu0 %v347
    %922 = vmatpush.msra.mxu0 %v343
    %923 = vmatmul.f32.gmra.mxu0 %v859
    %v924 = vpop.f32.mrf.mxu0
    %v925 = vadd.f32 0.0, %v924
    %926 = vdwg.mxu0
    %927 = vmatpush.msra.mxu0 %v404
    %928 = vmatpush.msra.mxu0 %v400
    %929 = vmatpush.msra.mxu0 %v396
    %930 = vmatpush.msra.mxu0 %v392
    %931 = vmatpush.msra.mxu0 %v388
    %932 = vmatpush.msra.mxu0 %v384
    %933 = vmatpush.msra.mxu0 %v380
    %934 = vmatpush.msra.mxu0 %v376
    %935 = vmatpush.msra.mxu0 %v372
    %936 = vmatpush.msra.mxu0 %v368
    %937 = vmatpush.msra.mxu0 %v364
    %938 = vmatpush.msra.mxu0 %v360
    %939 = vmatpush.msra.mxu0 %v356
    %940 = vmatpush.msra.mxu0 %v352
    %941 = vmatpush.msra.mxu0 %v348
    %942 = vmatpush.msra.mxu0 %v344
    %943 = vmatmul.f32.gmra.mxu0 %v859
    %v944 = vpop.f32.mrf.mxu0
    %v945 = vadd.f32 0.0, %v944
    %946 = vdwg.mxu0
    %v947 = vadd.f32 %v863, %v885
    %v948 = vadd.f32 %v864, %v905
    %v949 = vadd.f32 %v865, %v925
    %v950 = vadd.f32 %v866, %v945
    %v951 = vxor.u32 %v947, 2147483648
    %v952 = vmul.f32 %v951, 1.442695
    %v953 = vpow.pop %v952
    %v954 = vadd.f32 %v953, 1.0
    %v955 = vrcp.pop %v954
    %v956 = vmul.f32 %v954, %v955
    %v957 = vsub.f32 1.0, %v956
    %v958 = vmul.f32 %v955, %v957
    %v959 = vadd.f32 %v955, %v958
    %vm960 = vweird.f32 %v954
    %vm961 = vweird.f32 %v955
    %vm962 = vmor %vm960, %vm961
    %v963 = vsel %vm962, %v955, %v959
    %v964 = vand.u32 2147483647, %v954
    %vm965 = vcmp.eq.f32.partialorder %v964, 8.507059e+37
    %v966 = vand.u32 %v954, 2147483648
    %v967 = vor.u32 1.1754944e-38, %v966
    %v968 = vsel %vm965, %v967, %v963
    %v969 = vmul.f32 1.0, %v968
    %v970 = vxor.u32 %v948, 2147483648
    %v971 = vmul.f32 %v970, 1.442695
    %v972 = vpow.pop %v971
    %v973 = vadd.f32 %v972, 1.0
    %v974 = vrcp.pop %v973
    %v975 = vmul.f32 %v973, %v974
    %v976 = vsub.f32 1.0, %v975
    %v977 = vmul.f32 %v974, %v976
    %v978 = vadd.f32 %v974, %v977
    %vm979 = vweird.f32 %v973
    %vm980 = vweird.f32 %v974
    %vm981 = vmor %vm979, %vm980
    %v982 = vsel %vm981, %v974, %v978
    %v983 = vand.u32 2147483647, %v973
    %vm984 = vcmp.eq.f32.partialorder %v983, 8.507059e+37
    %v985 = vand.u32 %v973, 2147483648
    %v986 = vor.u32 1.1754944e-38, %v985
    %v987 = vsel %vm984, %v986, %v982
    %v988 = vmul.f32 1.0, %v987
    %v989 = vtanh.pop %v949
    %v990 = vxor.u32 %v950, 2147483648
    %v991 = vmul.f32 %v990, 1.442695
    %v992 = vpow.pop %v991
    %v993 = vadd.f32 %v992, 1.0
    %v994 = vrcp.pop %v993
    %v995 = vmul.f32 %v993, %v994
    %v996 = vsub.f32 1.0, %v995
    %v997 = vmul.f32 %v994, %v996
    %v998 = vadd.f32 %v994, %v997
    %vm999 = vweird.f32 %v993
    %vm1000 = vweird.f32 %v994
    %vm1001 = vmor %vm999, %vm1000
    %v1002 = vsel %vm1001, %v994, %v998
    %v1003 = vand.u32 2147483647, %v993
    %vm1004 = vcmp.eq.f32.partialorder %v1003, 8.507059e+37
    %v1005 = vand.u32 %v993, 2147483648
    %v1006 = vor.u32 1.1754944e-38, %v1005
    %v1007 = vsel %vm1004, %v1006, %v1002
    %v1008 = vmul.f32 1.0, %v1007
    %v1009 = vmul.f32 %v988, %v857
    %v1010 = vmul.f32 %v969, %v989
    %v1011 = vadd.f32 %v1009, %v1010
    %v1012 = vtanh.pop %v1011
    %v1013 = vmul.f32 %v1008, %v1012
    %s1014 = smul.u32 4, 4
    %s1015 = smul.addr %s1014, 8
    %s1016 = scalar_lea.vmem [#allocation2], %s1015
    %v1017 = vld [vmem:[%s1016] sm:$0xff]
    %v1018 = vld [vmem:[%s1016 + $0x8] sm:$0xff]
    %v1019 = vld [vmem:[%s1016 + $0x10] sm:$0xff]
    %v1020 = vld [vmem:[%s1016 + $0x18] sm:$0xff]
    %1021 = vmatpush.msra.mxu0 %v401
    %1022 = vmatpush.msra.mxu0 %v397
    %1023 = vmatpush.msra.mxu0 %v393
    %1024 = vmatpush.msra.mxu0 %v389
    %1025 = vmatpush.msra.mxu0 %v385
    %1026 = vmatpush.msra.mxu0 %v381
    %1027 = vmatpush.msra.mxu0 %v377
    %1028 = vmatpush.msra.mxu0 %v373
    %1029 = vmatpush.msra.mxu0 %v369
    %1030 = vmatpush.msra.mxu0 %v365
    %1031 = vmatpush.msra.mxu0 %v361
    %1032 = vmatpush.msra.mxu0 %v357
    %1033 = vmatpush.msra.mxu0 %v353
    %1034 = vmatpush.msra.mxu0 %v349
    %1035 = vmatpush.msra.mxu0 %v345
    %1036 = vmatpush.msra.mxu0 %v341
    %1037 = vmatmul.f32.gmra.mxu0 %v1013
    %v1038 = vpop.f32.mrf.mxu0
    %v1039 = vadd.f32 0.0, %v1038
    %1040 = vdwg.mxu0
    %1041 = vmatpush.msra.mxu0 %v402
    %1042 = vmatpush.msra.mxu0 %v398
    %1043 = vmatpush.msra.mxu0 %v394
    %1044 = vmatpush.msra.mxu0 %v390
    %1045 = vmatpush.msra.mxu0 %v386
    %1046 = vmatpush.msra.mxu0 %v382
    %1047 = vmatpush.msra.mxu0 %v378
    %1048 = vmatpush.msra.mxu0 %v374
    %1049 = vmatpush.msra.mxu0 %v370
    %1050 = vmatpush.msra.mxu0 %v366
    %1051 = vmatpush.msra.mxu0 %v362
    %1052 = vmatpush.msra.mxu0 %v358
    %1053 = vmatpush.msra.mxu0 %v354
    %1054 = vmatpush.msra.mxu0 %v350
    %1055 = vmatpush.msra.mxu0 %v346
    %1056 = vmatpush.msra.mxu0 %v342
    %1057 = vmatmul.f32.gmra.mxu0 %v1013
    %v1058 = vpop.f32.mrf.mxu0
    %v1059 = vadd.f32 0.0, %v1058
    %1060 = vdwg.mxu0
    %1061 = vmatpush.msra.mxu0 %v403
    %1062 = vmatpush.msra.mxu0 %v399
    %1063 = vmatpush.msra.mxu0 %v395
    %1064 = vmatpush.msra.mxu0 %v391
    %1065 = vmatpush.msra.mxu0 %v387
    %1066 = vmatpush.msra.mxu0 %v383
    %1067 = vmatpush.msra.mxu0 %v379
    %1068 = vmatpush.msra.mxu0 %v375
    %1069 = vmatpush.msra.mxu0 %v371
    %1070 = vmatpush.msra.mxu0 %v367
    %1071 = vmatpush.msra.mxu0 %v363
    %1072 = vmatpush.msra.mxu0 %v359
    %1073 = vmatpush.msra.mxu0 %v355
    %1074 = vmatpush.msra.mxu0 %v351
    %1075 = vmatpush.msra.mxu0 %v347
    %1076 = vmatpush.msra.mxu0 %v343
    %1077 = vmatmul.f32.gmra.mxu0 %v1013
    %v1078 = vpop.f32.mrf.mxu0
    %v1079 = vadd.f32 0.0, %v1078
    %1080 = vdwg.mxu0
    %1081 = vmatpush.msra.mxu0 %v404
    %1082 = vmatpush.msra.mxu0 %v400
    %1083 = vmatpush.msra.mxu0 %v396
    %1084 = vmatpush.msra.mxu0 %v392
    %1085 = vmatpush.msra.mxu0 %v388
    %1086 = vmatpush.msra.mxu0 %v384
    %1087 = vmatpush.msra.mxu0 %v380
    %1088 = vmatpush.msra.mxu0 %v376
    %1089 = vmatpush.msra.mxu0 %v372
    %1090 = vmatpush.msra.mxu0 %v368
    %1091 = vmatpush.msra.mxu0 %v364
    %1092 = vmatpush.msra.mxu0 %v360
    %1093 = vmatpush.msra.mxu0 %v356
    %1094 = vmatpush.msra.mxu0 %v352
    %1095 = vmatpush.msra.mxu0 %v348
    %1096 = vmatpush.msra.mxu0 %v344
    %1097 = vmatmul.f32.gmra.mxu0 %v1013
    %v1098 = vpop.f32.mrf.mxu0
    %v1099 = vadd.f32 0.0, %v1098
    %1100 = vdwg.mxu0
    %v1101 = vadd.f32 %v1017, %v1039
    %v1102 = vadd.f32 %v1018, %v1059
    %v1103 = vadd.f32 %v1019, %v1079
    %v1104 = vadd.f32 %v1020, %v1099
    %v1105 = vxor.u32 %v1101, 2147483648
    %v1106 = vmul.f32 %v1105, 1.442695
    %v1107 = vpow.pop %v1106
    %v1108 = vadd.f32 %v1107, 1.0
    %v1109 = vrcp.pop %v1108
    %v1110 = vmul.f32 %v1108, %v1109
    %v1111 = vsub.f32 1.0, %v1110
    %v1112 = vmul.f32 %v1109, %v1111
    %v1113 = vadd.f32 %v1109, %v1112
    %vm1114 = vweird.f32 %v1108
    %vm1115 = vweird.f32 %v1109
    %vm1116 = vmor %vm1114, %vm1115
    %v1117 = vsel %vm1116, %v1109, %v1113
    %v1118 = vand.u32 2147483647, %v1108
    %vm1119 = vcmp.eq.f32.partialorder %v1118, 8.507059e+37
    %v1120 = vand.u32 %v1108, 2147483648
    %v1121 = vor.u32 1.1754944e-38, %v1120
    %v1122 = vsel %vm1119, %v1121, %v1117
    %v1123 = vmul.f32 1.0, %v1122
    %v1124 = vxor.u32 %v1102, 2147483648
    %v1125 = vmul.f32 %v1124, 1.442695
    %v1126 = vpow.pop %v1125
    %v1127 = vadd.f32 %v1126, 1.0
    %v1128 = vrcp.pop %v1127
    %v1129 = vmul.f32 %v1127, %v1128
    %v1130 = vsub.f32 1.0, %v1129
    %v1131 = vmul.f32 %v1128, %v1130
    %v1132 = vadd.f32 %v1128, %v1131
    %vm1133 = vweird.f32 %v1127
    %vm1134 = vweird.f32 %v1128
    %vm1135 = vmor %vm1133, %vm1134
    %v1136 = vsel %vm1135, %v1128, %v1132
    %v1137 = vand.u32 2147483647, %v1127
    %vm1138 = vcmp.eq.f32.partialorder %v1137, 8.507059e+37
    %v1139 = vand.u32 %v1127, 2147483648
    %v1140 = vor.u32 1.1754944e-38, %v1139
    %v1141 = vsel %vm1138, %v1140, %v1136
    %v1142 = vmul.f32 1.0, %v1141
    %v1143 = vtanh.pop %v1103
    %v1144 = vxor.u32 %v1104, 2147483648
    %v1145 = vmul.f32 %v1144, 1.442695
    %v1146 = vpow.pop %v1145
    %v1147 = vadd.f32 %v1146, 1.0
    %v1148 = vrcp.pop %v1147
    %v1149 = vmul.f32 %v1147, %v1148
    %v1150 = vsub.f32 1.0, %v1149
    %v1151 = vmul.f32 %v1148, %v1150
    %v1152 = vadd.f32 %v1148, %v1151
    %vm1153 = vweird.f32 %v1147
    %vm1154 = vweird.f32 %v1148
    %vm1155 = vmor %vm1153, %vm1154
    %v1156 = vsel %vm1155, %v1148, %v1152
    %v1157 = vand.u32 2147483647, %v1147
    %vm1158 = vcmp.eq.f32.partialorder %v1157, 8.507059e+37
    %v1159 = vand.u32 %v1147, 2147483648
    %v1160 = vor.u32 1.1754944e-38, %v1159
    %v1161 = vsel %vm1158, %v1160, %v1156
    %v1162 = vmul.f32 1.0, %v1161
    %v1163 = vmul.f32 %v1142, %v1011
    %v1164 = vmul.f32 %v1123, %v1143
    %v1165 = vadd.f32 %v1163, %v1164
    %v1166 = vtanh.pop %v1165
    %v1167 = vmul.f32 %v1162, %v1166
    %s1168 = smul.u32 5, 4
    %s1169 = smul.addr %s1168, 8
    %s1170 = scalar_lea.vmem [#allocation2], %s1169
    %v1171 = vld [vmem:[%s1170] sm:$0xff]
    %v1172 = vld [vmem:[%s1170 + $0x8] sm:$0xff]
    %v1173 = vld [vmem:[%s1170 + $0x10] sm:$0xff]
    %v1174 = vld [vmem:[%s1170 + $0x18] sm:$0xff]
    %1175 = vmatpush.msra.mxu0 %v401
    %1176 = vmatpush.msra.mxu0 %v397
    %1177 = vmatpush.msra.mxu0 %v393
    %1178 = vmatpush.msra.mxu0 %v389
    %1179 = vmatpush.msra.mxu0 %v385
    %1180 = vmatpush.msra.mxu0 %v381
    %1181 = vmatpush.msra.mxu0 %v377
    %1182 = vmatpush.msra.mxu0 %v373
    %1183 = vmatpush.msra.mxu0 %v369
    %1184 = vmatpush.msra.mxu0 %v365
    %1185 = vmatpush.msra.mxu0 %v361
    %1186 = vmatpush.msra.mxu0 %v357
    %1187 = vmatpush.msra.mxu0 %v353
    %1188 = vmatpush.msra.mxu0 %v349
    %1189 = vmatpush.msra.mxu0 %v345
    %1190 = vmatpush.msra.mxu0 %v341
    %1191 = vmatmul.f32.gmra.mxu0 %v1167
    %v1192 = vpop.f32.mrf.mxu0
    %v1193 = vadd.f32 0.0, %v1192
    %1194 = vdwg.mxu0
    %1195 = vmatpush.msra.mxu0 %v402
    %1196 = vmatpush.msra.mxu0 %v398
    %1197 = vmatpush.msra.mxu0 %v394
    %1198 = vmatpush.msra.mxu0 %v390
    %1199 = vmatpush.msra.mxu0 %v386
    %1200 = vmatpush.msra.mxu0 %v382
    %1201 = vmatpush.msra.mxu0 %v378
    %1202 = vmatpush.msra.mxu0 %v374
    %1203 = vmatpush.msra.mxu0 %v370
    %1204 = vmatpush.msra.mxu0 %v366
    %1205 = vmatpush.msra.mxu0 %v362
    %1206 = vmatpush.msra.mxu0 %v358
    %1207 = vmatpush.msra.mxu0 %v354
    %1208 = vmatpush.msra.mxu0 %v350
    %1209 = vmatpush.msra.mxu0 %v346
    %1210 = vmatpush.msra.mxu0 %v342
    %1211 = vmatmul.f32.gmra.mxu0 %v1167
    %v1212 = vpop.f32.mrf.mxu0
    %v1213 = vadd.f32 0.0, %v1212
    %1214 = vdwg.mxu0
    %1215 = vmatpush.msra.mxu0 %v403
    %1216 = vmatpush.msra.mxu0 %v399
    %1217 = vmatpush.msra.mxu0 %v395
    %1218 = vmatpush.msra.mxu0 %v391
    %1219 = vmatpush.msra.mxu0 %v387
    %1220 = vmatpush.msra.mxu0 %v383
    %1221 = vmatpush.msra.mxu0 %v379
    %1222 = vmatpush.msra.mxu0 %v375
    %1223 = vmatpush.msra.mxu0 %v371
    %1224 = vmatpush.msra.mxu0 %v367
    %1225 = vmatpush.msra.mxu0 %v363
    %1226 = vmatpush.msra.mxu0 %v359
    %1227 = vmatpush.msra.mxu0 %v355
    %1228 = vmatpush.msra.mxu0 %v351
    %1229 = vmatpush.msra.mxu0 %v347
    %1230 = vmatpush.msra.mxu0 %v343
    %1231 = vmatmul.f32.gmra.mxu0 %v1167
    %v1232 = vpop.f32.mrf.mxu0
    %v1233 = vadd.f32 0.0, %v1232
    %1234 = vdwg.mxu0
    %1235 = vmatpush.msra.mxu0 %v404
    %1236 = vmatpush.msra.mxu0 %v400
    %1237 = vmatpush.msra.mxu0 %v396
    %1238 = vmatpush.msra.mxu0 %v392
    %1239 = vmatpush.msra.mxu0 %v388
    %1240 = vmatpush.msra.mxu0 %v384
    %1241 = vmatpush.msra.mxu0 %v380
    %1242 = vmatpush.msra.mxu0 %v376
    %1243 = vmatpush.msra.mxu0 %v372
    %1244 = vmatpush.msra.mxu0 %v368
    %1245 = vmatpush.msra.mxu0 %v364
    %1246 = vmatpush.msra.mxu0 %v360
    %1247 = vmatpush.msra.mxu0 %v356
    %1248 = vmatpush.msra.mxu0 %v352
    %1249 = vmatpush.msra.mxu0 %v348
    %1250 = vmatpush.msra.mxu0 %v344
    %1251 = vmatmul.f32.gmra.mxu0 %v1167
    %v1252 = vpop.f32.mrf.mxu0
    %v1253 = vadd.f32 0.0, %v1252
    %1254 = vdwg.mxu0
    %v1255 = vadd.f32 %v1171, %v1193
    %v1256 = vadd.f32 %v1172, %v1213
    %v1257 = vadd.f32 %v1173, %v1233
    %v1258 = vadd.f32 %v1174, %v1253
    %v1259 = vxor.u32 %v1255, 2147483648
    %v1260 = vmul.f32 %v1259, 1.442695
    %v1261 = vpow.pop %v1260
    %v1262 = vadd.f32 %v1261, 1.0
    %v1263 = vrcp.pop %v1262
    %v1264 = vmul.f32 %v1262, %v1263
    %v1265 = vsub.f32 1.0, %v1264
    %v1266 = vmul.f32 %v1263, %v1265
    %v1267 = vadd.f32 %v1263, %v1266
    %vm1268 = vweird.f32 %v1262
    %vm1269 = vweird.f32 %v1263
    %vm1270 = vmor %vm1268, %vm1269
    %v1271 = vsel %vm1270, %v1263, %v1267
    %v1272 = vand.u32 2147483647, %v1262
    %vm1273 = vcmp.eq.f32.partialorder %v1272, 8.507059e+37
    %v1274 = vand.u32 %v1262, 2147483648
    %v1275 = vor.u32 1.1754944e-38, %v1274
    %v1276 = vsel %vm1273, %v1275, %v1271
    %v1277 = vmul.f32 1.0, %v1276
    %v1278 = vxor.u32 %v1256, 2147483648
    %v1279 = vmul.f32 %v1278, 1.442695
    %v1280 = vpow.pop %v1279
    %v1281 = vadd.f32 %v1280, 1.0
    %v1282 = vrcp.pop %v1281
    %v1283 = vmul.f32 %v1281, %v1282
    %v1284 = vsub.f32 1.0, %v1283
    %v1285 = vmul.f32 %v1282, %v1284
    %v1286 = vadd.f32 %v1282, %v1285
    %vm1287 = vweird.f32 %v1281
    %vm1288 = vweird.f32 %v1282
    %vm1289 = vmor %vm1287, %vm1288
    %v1290 = vsel %vm1289, %v1282, %v1286
    %v1291 = vand.u32 2147483647, %v1281
    %vm1292 = vcmp.eq.f32.partialorder %v1291, 8.507059e+37
    %v1293 = vand.u32 %v1281, 2147483648
    %v1294 = vor.u32 1.1754944e-38, %v1293
    %v1295 = vsel %vm1292, %v1294, %v1290
    %v1296 = vmul.f32 1.0, %v1295
    %v1297 = vtanh.pop %v1257
    %v1298 = vxor.u32 %v1258, 2147483648
    %v1299 = vmul.f32 %v1298, 1.442695
    %v1300 = vpow.pop %v1299
    %v1301 = vadd.f32 %v1300, 1.0
    %v1302 = vrcp.pop %v1301
    %v1303 = vmul.f32 %v1301, %v1302
    %v1304 = vsub.f32 1.0, %v1303
    %v1305 = vmul.f32 %v1302, %v1304
    %v1306 = vadd.f32 %v1302, %v1305
    %vm1307 = vweird.f32 %v1301
    %vm1308 = vweird.f32 %v1302
    %vm1309 = vmor %vm1307, %vm1308
    %v1310 = vsel %vm1309, %v1302, %v1306
    %v1311 = vand.u32 2147483647, %v1301
    %vm1312 = vcmp.eq.f32.partialorder %v1311, 8.507059e+37
    %v1313 = vand.u32 %v1301, 2147483648
    %v1314 = vor.u32 1.1754944e-38, %v1313
    %v1315 = vsel %vm1312, %v1314, %v1310
    %v1316 = vmul.f32 1.0, %v1315
    %v1317 = vmul.f32 %v1296, %v1165
    %v1318 = vmul.f32 %v1277, %v1297
    %v1319 = vadd.f32 %v1317, %v1318
    %v1320 = vtanh.pop %v1319
    %v1321 = vmul.f32 %v1316, %v1320
    %s1322 = smul.u32 6, 4
    %s1323 = smul.addr %s1322, 8
    %s1324 = scalar_lea.vmem [#allocation2], %s1323
    %v1325 = vld [vmem:[%s1324] sm:$0xff]
    %v1326 = vld [vmem:[%s1324 + $0x8] sm:$0xff]
    %v1327 = vld [vmem:[%s1324 + $0x10] sm:$0xff]
    %v1328 = vld [vmem:[%s1324 + $0x18] sm:$0xff]
    %1329 = vmatpush.msra.mxu0 %v401
    %1330 = vmatpush.msra.mxu0 %v397
    %1331 = vmatpush.msra.mxu0 %v393
    %1332 = vmatpush.msra.mxu0 %v389
    %1333 = vmatpush.msra.mxu0 %v385
    %1334 = vmatpush.msra.mxu0 %v381
    %1335 = vmatpush.msra.mxu0 %v377
    %1336 = vmatpush.msra.mxu0 %v373
    %1337 = vmatpush.msra.mxu0 %v369
    %1338 = vmatpush.msra.mxu0 %v365
    %1339 = vmatpush.msra.mxu0 %v361
    %1340 = vmatpush.msra.mxu0 %v357
    %1341 = vmatpush.msra.mxu0 %v353
    %1342 = vmatpush.msra.mxu0 %v349
    %1343 = vmatpush.msra.mxu0 %v345
    %1344 = vmatpush.msra.mxu0 %v341
    %1345 = vmatmul.f32.gmra.mxu0 %v1321
    %v1346 = vpop.f32.mrf.mxu0
    %v1347 = vadd.f32 0.0, %v1346
    %1348 = vdwg.mxu0
    %1349 = vmatpush.msra.mxu0 %v402
    %1350 = vmatpush.msra.mxu0 %v398
    %1351 = vmatpush.msra.mxu0 %v394
    %1352 = vmatpush.msra.mxu0 %v390
    %1353 = vmatpush.msra.mxu0 %v386
    %1354 = vmatpush.msra.mxu0 %v382
    %1355 = vmatpush.msra.mxu0 %v378
    %1356 = vmatpush.msra.mxu0 %v374
    %1357 = vmatpush.msra.mxu0 %v370
    %1358 = vmatpush.msra.mxu0 %v366
    %1359 = vmatpush.msra.mxu0 %v362
    %1360 = vmatpush.msra.mxu0 %v358
    %1361 = vmatpush.msra.mxu0 %v354
    %1362 = vmatpush.msra.mxu0 %v350
    %1363 = vmatpush.msra.mxu0 %v346
    %1364 = vmatpush.msra.mxu0 %v342
    %1365 = vmatmul.f32.gmra.mxu0 %v1321
    %v1366 = vpop.f32.mrf.mxu0
    %v1367 = vadd.f32 0.0, %v1366
    %1368 = vdwg.mxu0
    %1369 = vmatpush.msra.mxu0 %v403
    %1370 = vmatpush.msra.mxu0 %v399
    %1371 = vmatpush.msra.mxu0 %v395
    %1372 = vmatpush.msra.mxu0 %v391
    %1373 = vmatpush.msra.mxu0 %v387
    %1374 = vmatpush.msra.mxu0 %v383
    %1375 = vmatpush.msra.mxu0 %v379
    %1376 = vmatpush.msra.mxu0 %v375
    %1377 = vmatpush.msra.mxu0 %v371
    %1378 = vmatpush.msra.mxu0 %v367
    %1379 = vmatpush.msra.mxu0 %v363
    %1380 = vmatpush.msra.mxu0 %v359
    %1381 = vmatpush.msra.mxu0 %v355
    %1382 = vmatpush.msra.mxu0 %v351
    %1383 = vmatpush.msra.mxu0 %v347
    %1384 = vmatpush.msra.mxu0 %v343
    %1385 = vmatmul.f32.gmra.mxu0 %v1321
    %v1386 = vpop.f32.mrf.mxu0
    %v1387 = vadd.f32 0.0, %v1386
    %1388 = vdwg.mxu0
    %1389 = vmatpush.msra.mxu0 %v404
    %1390 = vmatpush.msra.mxu0 %v400
    %1391 = vmatpush.msra.mxu0 %v396
    %1392 = vmatpush.msra.mxu0 %v392
    %1393 = vmatpush.msra.mxu0 %v388
    %1394 = vmatpush.msra.mxu0 %v384
    %1395 = vmatpush.msra.mxu0 %v380
    %1396 = vmatpush.msra.mxu0 %v376
    %1397 = vmatpush.msra.mxu0 %v372
    %1398 = vmatpush.msra.mxu0 %v368
    %1399 = vmatpush.msra.mxu0 %v364
    %1400 = vmatpush.msra.mxu0 %v360
    %1401 = vmatpush.msra.mxu0 %v356
    %1402 = vmatpush.msra.mxu0 %v352
    %1403 = vmatpush.msra.mxu0 %v348
    %1404 = vmatpush.msra.mxu0 %v344
    %1405 = vmatmul.f32.gmra.mxu0 %v1321
    %v1406 = vpop.f32.mrf.mxu0
    %v1407 = vadd.f32 0.0, %v1406
    %1408 = vdwg.mxu0
    %v1409 = vadd.f32 %v1325, %v1347
    %v1410 = vadd.f32 %v1326, %v1367
    %v1411 = vadd.f32 %v1327, %v1387
    %v1412 = vadd.f32 %v1328, %v1407
    %v1413 = vxor.u32 %v1409, 2147483648
    %v1414 = vmul.f32 %v1413, 1.442695
    %v1415 = vpow.pop %v1414
    %v1416 = vadd.f32 %v1415, 1.0
    %v1417 = vrcp.pop %v1416
    %v1418 = vmul.f32 %v1416, %v1417
    %v1419 = vsub.f32 1.0, %v1418
    %v1420 = vmul.f32 %v1417, %v1419
    %v1421 = vadd.f32 %v1417, %v1420
    %vm1422 = vweird.f32 %v1416
    %vm1423 = vweird.f32 %v1417
    %vm1424 = vmor %vm1422, %vm1423
    %v1425 = vsel %vm1424, %v1417, %v1421
    %v1426 = vand.u32 2147483647, %v1416
    %vm1427 = vcmp.eq.f32.partialorder %v1426, 8.507059e+37
    %v1428 = vand.u32 %v1416, 2147483648
    %v1429 = vor.u32 1.1754944e-38, %v1428
    %v1430 = vsel %vm1427, %v1429, %v1425
    %v1431 = vmul.f32 1.0, %v1430
    %v1432 = vxor.u32 %v1410, 2147483648
    %v1433 = vmul.f32 %v1432, 1.442695
    %v1434 = vpow.pop %v1433
    %v1435 = vadd.f32 %v1434, 1.0
    %v1436 = vrcp.pop %v1435
    %v1437 = vmul.f32 %v1435, %v1436
    %v1438 = vsub.f32 1.0, %v1437
    %v1439 = vmul.f32 %v1436, %v1438
    %v1440 = vadd.f32 %v1436, %v1439
    %vm1441 = vweird.f32 %v1435
    %vm1442 = vweird.f32 %v1436
    %vm1443 = vmor %vm1441, %vm1442
    %v1444 = vsel %vm1443, %v1436, %v1440
    %v1445 = vand.u32 2147483647, %v1435
    %vm1446 = vcmp.eq.f32.partialorder %v1445, 8.507059e+37
    %v1447 = vand.u32 %v1435, 2147483648
    %v1448 = vor.u32 1.1754944e-38, %v1447
    %v1449 = vsel %vm1446, %v1448, %v1444
    %v1450 = vmul.f32 1.0, %v1449
    %v1451 = vtanh.pop %v1411
    %v1452 = vxor.u32 %v1412, 2147483648
    %v1453 = vmul.f32 %v1452, 1.442695
    %v1454 = vpow.pop %v1453
    %v1455 = vadd.f32 %v1454, 1.0
    %v1456 = vrcp.pop %v1455
    %v1457 = vmul.f32 %v1455, %v1456
    %v1458 = vsub.f32 1.0, %v1457
    %v1459 = vmul.f32 %v1456, %v1458
    %v1460 = vadd.f32 %v1456, %v1459
    %vm1461 = vweird.f32 %v1455
    %vm1462 = vweird.f32 %v1456
    %vm1463 = vmor %vm1461, %vm1462
    %v1464 = vsel %vm1463, %v1456, %v1460
    %v1465 = vand.u32 2147483647, %v1455
    %vm1466 = vcmp.eq.f32.partialorder %v1465, 8.507059e+37
    %v1467 = vand.u32 %v1455, 2147483648
    %v1468 = vor.u32 1.1754944e-38, %v1467
    %v1469 = vsel %vm1466, %v1468, %v1464
    %v1470 = vmul.f32 1.0, %v1469
    %v1471 = vmul.f32 %v1450, %v1319
    %v1472 = vmul.f32 %v1431, %v1451
    %v1473 = vadd.f32 %v1471, %v1472
    %v1474 = vtanh.pop %v1473
    %v1475 = vmul.f32 %v1470, %v1474
    %s1476 = smul.u32 7, 4
    %s1477 = smul.addr %s1476, 8
    %s1478 = scalar_lea.vmem [#allocation2], %s1477
    %v1479 = vld [vmem:[%s1478] sm:$0xff]
    %v1480 = vld [vmem:[%s1478 + $0x8] sm:$0xff]
    %v1481 = vld [vmem:[%s1478 + $0x10] sm:$0xff]
    %v1482 = vld [vmem:[%s1478 + $0x18] sm:$0xff]
    %1483 = vmatpush.msra.mxu0 %v401
    %1484 = vmatpush.msra.mxu0 %v397
    %1485 = vmatpush.msra.mxu0 %v393
    %1486 = vmatpush.msra.mxu0 %v389
    %1487 = vmatpush.msra.mxu0 %v385
    %1488 = vmatpush.msra.mxu0 %v381
    %1489 = vmatpush.msra.mxu0 %v377
    %1490 = vmatpush.msra.mxu0 %v373
    %1491 = vmatpush.msra.mxu0 %v369
    %1492 = vmatpush.msra.mxu0 %v365
    %1493 = vmatpush.msra.mxu0 %v361
    %1494 = vmatpush.msra.mxu0 %v357
    %1495 = vmatpush.msra.mxu0 %v353
    %1496 = vmatpush.msra.mxu0 %v349
    %1497 = vmatpush.msra.mxu0 %v345
    %1498 = vmatpush.msra.mxu0 %v341
    %1499 = vmatmul.f32.gmra.mxu0 %v1475
    %v1500 = vpop.f32.mrf.mxu0
    %v1501 = vadd.f32 0.0, %v1500
    %1502 = vdwg.mxu0
    %1503 = vmatpush.msra.mxu0 %v402
    %1504 = vmatpush.msra.mxu0 %v398
    %1505 = vmatpush.msra.mxu0 %v394
    %1506 = vmatpush.msra.mxu0 %v390
    %1507 = vmatpush.msra.mxu0 %v386
    %1508 = vmatpush.msra.mxu0 %v382
    %1509 = vmatpush.msra.mxu0 %v378
    %1510 = vmatpush.msra.mxu0 %v374
    %1511 = vmatpush.msra.mxu0 %v370
    %1512 = vmatpush.msra.mxu0 %v366
    %1513 = vmatpush.msra.mxu0 %v362
    %1514 = vmatpush.msra.mxu0 %v358
    %1515 = vmatpush.msra.mxu0 %v354
    %1516 = vmatpush.msra.mxu0 %v350
    %1517 = vmatpush.msra.mxu0 %v346
    %1518 = vmatpush.msra.mxu0 %v342
    %1519 = vmatmul.f32.gmra.mxu0 %v1475
    %v1520 = vpop.f32.mrf.mxu0
    %v1521 = vadd.f32 0.0, %v1520
    %1522 = vdwg.mxu0
    %1523 = vmatpush.msra.mxu0 %v403
    %1524 = vmatpush.msra.mxu0 %v399
    %1525 = vmatpush.msra.mxu0 %v395
    %1526 = vmatpush.msra.mxu0 %v391
    %1527 = vmatpush.msra.mxu0 %v387
    %1528 = vmatpush.msra.mxu0 %v383
    %1529 = vmatpush.msra.mxu0 %v379
    %1530 = vmatpush.msra.mxu0 %v375
    %1531 = vmatpush.msra.mxu0 %v371
    %1532 = vmatpush.msra.mxu0 %v367
    %1533 = vmatpush.msra.mxu0 %v363
    %1534 = vmatpush.msra.mxu0 %v359
    %1535 = vmatpush.msra.mxu0 %v355
    %1536 = vmatpush.msra.mxu0 %v351
    %1537 = vmatpush.msra.mxu0 %v347
    %1538 = vmatpush.msra.mxu0 %v343
    %1539 = vmatmul.f32.gmra.mxu0 %v1475
    %v1540 = vpop.f32.mrf.mxu0
    %v1541 = vadd.f32 0.0, %v1540
    %1542 = vdwg.mxu0
    %1543 = vmatpush.msra.mxu0 %v404
    %1544 = vmatpush.msra.mxu0 %v400
    %1545 = vmatpush.msra.mxu0 %v396
    %1546 = vmatpush.msra.mxu0 %v392
    %1547 = vmatpush.msra.mxu0 %v388
    %1548 = vmatpush.msra.mxu0 %v384
    %1549 = vmatpush.msra.mxu0 %v380
    %1550 = vmatpush.msra.mxu0 %v376
    %1551 = vmatpush.msra.mxu0 %v372
    %1552 = vmatpush.msra.mxu0 %v368
    %1553 = vmatpush.msra.mxu0 %v364
    %1554 = vmatpush.msra.mxu0 %v360
    %1555 = vmatpush.msra.mxu0 %v356
    %1556 = vmatpush.msra.mxu0 %v352
    %1557 = vmatpush.msra.mxu0 %v348
    %1558 = vmatpush.msra.mxu0 %v344
    %1559 = vmatmul.f32.gmra.mxu0 %v1475
    %v1560 = vpop.f32.mrf.mxu0
    %v1561 = vadd.f32 0.0, %v1560
    %1562 = vdwg.mxu0
    %v1563 = vadd.f32 %v1479, %v1501
    %v1564 = vadd.f32 %v1480, %v1521
    %v1565 = vadd.f32 %v1481, %v1541
    %v1566 = vadd.f32 %v1482, %v1561
    %v1567 = vxor.u32 %v1563, 2147483648
    %v1568 = vmul.f32 %v1567, 1.442695
    %v1569 = vpow.pop %v1568
    %v1570 = vadd.f32 %v1569, 1.0
    %v1571 = vrcp.pop %v1570
    %v1572 = vmul.f32 %v1570, %v1571
    %v1573 = vsub.f32 1.0, %v1572
    %v1574 = vmul.f32 %v1571, %v1573
    %v1575 = vadd.f32 %v1571, %v1574
    %vm1576 = vweird.f32 %v1570
    %vm1577 = vweird.f32 %v1571
    %vm1578 = vmor %vm1576, %vm1577
    %v1579 = vsel %vm1578, %v1571, %v1575
    %v1580 = vand.u32 2147483647, %v1570
    %vm1581 = vcmp.eq.f32.partialorder %v1580, 8.507059e+37
    %v1582 = vand.u32 %v1570, 2147483648
    %v1583 = vor.u32 1.1754944e-38, %v1582
    %v1584 = vsel %vm1581, %v1583, %v1579
    %v1585 = vmul.f32 1.0, %v1584
    %v1586 = vxor.u32 %v1564, 2147483648
    %v1587 = vmul.f32 %v1586, 1.442695
    %v1588 = vpow.pop %v1587
    %v1589 = vadd.f32 %v1588, 1.0
    %v1590 = vrcp.pop %v1589
    %v1591 = vmul.f32 %v1589, %v1590
    %v1592 = vsub.f32 1.0, %v1591
    %v1593 = vmul.f32 %v1590, %v1592
    %v1594 = vadd.f32 %v1590, %v1593
    %vm1595 = vweird.f32 %v1589
    %vm1596 = vweird.f32 %v1590
    %vm1597 = vmor %vm1595, %vm1596
    %v1598 = vsel %vm1597, %v1590, %v1594
    %v1599 = vand.u32 2147483647, %v1589
    %vm1600 = vcmp.eq.f32.partialorder %v1599, 8.507059e+37
    %v1601 = vand.u32 %v1589, 2147483648
    %v1602 = vor.u32 1.1754944e-38, %v1601
    %v1603 = vsel %vm1600, %v1602, %v1598
    %v1604 = vmul.f32 1.0, %v1603
    %v1605 = vtanh.pop %v1565
    %v1606 = vxor.u32 %v1566, 2147483648
    %v1607 = vmul.f32 %v1606, 1.442695
    %v1608 = vpow.pop %v1607
    %v1609 = vadd.f32 %v1608, 1.0
    %v1610 = vrcp.pop %v1609
    %v1611 = vmul.f32 %v1609, %v1610
    %v1612 = vsub.f32 1.0, %v1611
    %v1613 = vmul.f32 %v1610, %v1612
    %v1614 = vadd.f32 %v1610, %v1613
    %vm1615 = vweird.f32 %v1609
    %vm1616 = vweird.f32 %v1610
    %vm1617 = vmor %vm1615, %vm1616
    %v1618 = vsel %vm1617, %v1610, %v1614
    %v1619 = vand.u32 2147483647, %v1609
    %vm1620 = vcmp.eq.f32.partialorder %v1619, 8.507059e+37
    %v1621 = vand.u32 %v1609, 2147483648
    %v1622 = vor.u32 1.1754944e-38, %v1621
    %v1623 = vsel %vm1620, %v1622, %v1618
    %v1624 = vmul.f32 1.0, %v1623
    %v1625 = vmul.f32 %v1604, %v1473
    %v1626 = vmul.f32 %v1585, %v1605
    %v1627 = vadd.f32 %v1625, %v1626
    %v1628 = vtanh.pop %v1627
    %v1629 = vmul.f32 %v1624, %v1628
    %1630 = vst [vmem:[#allocation3] sm:$0xff] %v1629
    %1631 = vst [vmem:[#allocation4] sm:$0xff] %v1627
    // Predicated region
    $region42: #{tpu_custom_call.1} parent=1 // pred_check
      %p1632 = pneg %p71
    $region43: #{tpu_custom_call.1} parent=1 // pred_check_branch
      %1634 = sbr.rel (%p1632) target = $region45
    $region44: #{tpu_custom_call.1} parent=1 // pred_region
      %v1635 = vld [vmem:[#allocation10] sm:$0xff]
      %v1636 = vld [vmem:[#allocation10 + $0x8] sm:$0xff]
      %v1637 = vld [vmem:[#allocation10 + $0x10] sm:$0xff]
      %v1638 = vld [vmem:[#allocation10 + $0x18] sm:$0xff]
      %v1639 = vld [vmem:[#allocation10 + $0x20] sm:$0xff]
      %v1640 = vld [vmem:[#allocation10 + $0x28] sm:$0xff]
      %v1641 = vld [vmem:[#allocation10 + $0x30] sm:$0xff]
      %v1642 = vld [vmem:[#allocation10 + $0x38] sm:$0xff]
      %v1643 = vld [vmem:[#allocation10 + $0x40] sm:$0xff]
      %v1644 = vld [vmem:[#allocation10 + $0x48] sm:$0xff]
      %v1645 = vld [vmem:[#allocation10 + $0x50] sm:$0xff]
      %v1646 = vld [vmem:[#allocation10 + $0x58] sm:$0xff]
      %v1647 = vld [vmem:[#allocation10 + $0x60] sm:$0xff]
      %v1648 = vld [vmem:[#allocation10 + $0x68] sm:$0xff]
      %v1649 = vld [vmem:[#allocation10 + $0x70] sm:$0xff]
      %v1650 = vld [vmem:[#allocation10 + $0x78] sm:$0xff]
      %v1651 = vld [vmem:[%s5] sm:$0x1]
      %v1653 = vperm.slane %v1651, 0
      %1655 = vmatpush.msra.mxu0 %v1650
      %1656 = vmatpush.msra.mxu0 %v1649
      %1657 = vmatpush.msra.mxu0 %v1648
      %1658 = vmatpush.msra.mxu0 %v1647
      %1659 = vmatpush.msra.mxu0 %v1646
      %1660 = vmatpush.msra.mxu0 %v1645
      %1661 = vmatpush.msra.mxu0 %v1644
      %1662 = vmatpush.msra.mxu0 %v1643
      %1663 = vmatpush.msra.mxu0 %v1642
      %1664 = vmatpush.msra.mxu0 %v1641
      %1665 = vmatpush.msra.mxu0 %v1640
      %1666 = vmatpush.msra.mxu0 %v1639
      %1667 = vmatpush.msra.mxu0 %v1638
      %1668 = vmatpush.msra.mxu0 %v1637
      %1669 = vmatpush.msra.mxu0 %v1636
      %1670 = vmatpush.msra.mxu0 %v1635
      %1671 = vmatmul.f32.gmra.mxu0 %v1629
      %v1672 = vpop.f32.mrf.mxu0
      %v1673 = vadd.f32 %v1653, %v1672
      %1674 = vdwg.mxu0
      %1675 = vst [vmem:[#allocation11] sm:$0xff] %v1673
    $region45: #{tpu_custom_call.1} parent=1 // pred_fallthru
      _
    // Predicated region
    $region46: #{tpu_custom_call.1} parent=1 // pred_check
      _
    $region47: #{tpu_custom_call.1} parent=1 // pred_check_branch
      %1677 = sbr.rel (0) target = $region49
    $region48: #{tpu_custom_call.1} parent=1 // pred_region
      %1679 = vsyncadd [#allocation7], 0
      %s1681 = sshll.u32 [#allocation11], 4
      %s1682 = int_to_ptr.vmem [resolvable:$true] %s1681
      %s1683 = sshll.u32 %s6, 4
      %s1684 = int_to_ptr.hbm [resolvable:$true] %s1683
      %1686 = dma.vmem_to_hbm [thread:$0]  %s1682, 128, %s1684, [#allocation7]
    $region49: #{tpu_custom_call.1} parent=1 // pred_fallthru
      _
    // Predicated region
    $region50: #{tpu_custom_call.1} parent=1 // pred_check
      _
    $region51: #{tpu_custom_call.1} parent=1 // pred_check_branch
      %1688 = sbr.rel (0) target = $region53
    $region52: #{tpu_custom_call.1} parent=1 // pred_region
      %1690 = dma.done [#allocation7], 128
    $region53: #{tpu_custom_call.1} parent=1 // pred_fallthru
      _
    %1691 = vsyncpa [#allocation6], 1
    %1692 = vsyncpa [#allocation9], 1
    %1693 = vsyncpa [#allocation7], 1

</llo_original>
